<compile_context>
chip_gen: v6e
topology: v6e:2x2x1
jax: 0.10.0
libtpu: 0.0.40
codegen_flags: <defaults>
</compile_context>

<pallas_src>
import jax
import jax.numpy as jnp
from jax import lax
from jax.experimental import pallas as pl
from jax.experimental.pallas import tpu as pltpu


_INV_SQRT2 = 0.7071067811865475
_LN_EPS = 1e-5


def _gelu_exact(x):
    # PyTorch nn.GELU() default = exact erf formulation.
    return 0.5 * x * (1.0 + lax.erf(x * _INV_SQRT2))


# --------------------------- fused decoder kernel ------------------------------


def _ln_conv_stage(h, gamma, beta, w2, b, *, kernel_size, dilation, apply_gelu):
    """LayerNorm(last axis) -> dilated 'same' conv as ONE im2col matmul [-> GELU].

    h:     (Cin, L)        one sample's activation (f32)
    gamma: (1, L)          LayerNorm weight (applied over the last axis)
    beta:  (1, L)          LayerNorm bias
    w2:    (Cout, K*Cin)   conv weight reshaped so the row order is [k][ci]
    b:     (Cout, 1)       conv bias
    """
    cin, length = h.shape
    K = kernel_size

    # LayerNorm over the last axis (exactly what the PyTorch module does on NCL).
    mean = jnp.mean(h, axis=-1, keepdims=True)
    centered = h - mean
    var = jnp.mean(centered * centered, axis=-1, keepdims=True)
    hn = centered * lax.rsqrt(var + _LN_EPS)
    hn = hn * gamma + beta

    # im2col: build the (K*Cin, L) matrix once, then a single MXU matmul.
    if K == 1:
        col = hn
    else:
        pad = (K - 1) * dilation // 2
        z = jnp.zeros((cin, pad), dtype=hn.dtype)
        hp = jnp.concatenate([z, hn, z], axis=-1)                  # (Cin, L + 2*pad)
        taps = [lax.slice(hp, (0, k * dilation), (cin, k * dilation + length))
                for k in range(K)]
        col = jnp.concatenate(taps, axis=0)                        # (K*Cin, L)

    y = jnp.dot(w2, col, preferred_element_type=jnp.float32) + b
    if apply_gelu:
        y = _gelu_exact(y)
    return y


def _make_decoder_kernel(stage_cfgs):
    """stage_cfgs: tuple of (kernel_size, dilation, apply_gelu, is_block_end)."""
    n_stages = len(stage_cfgs)

    def kernel(*refs):
        x_ref = refs[0]
        o_ref = refs[-1]
        p_refs = refs[1:-1]
        assert len(p_refs) == 4 * n_stages

        h = x_ref[0].astype(jnp.float32)              # (C, L)  -- one sample
        res = h                                       # ConvBlock residual input
        for si, (K, dil, gelu, block_end) in enumerate(stage_cfgs):
            g_ref, beta_ref, w_ref, b_ref = p_refs[4 * si: 4 * si + 4]
            h = _ln_conv_stage(h, g_ref[...], beta_ref[...], w_ref[...], b_ref[...],
                               kernel_size=K, dilation=dil, apply_gelu=gelu)
            if block_end:                             # end of a ConvBlock
                h = h + res
                res = h
        o_ref[0] = h.astype(o_ref.dtype)

    return kernel


def _const_index_map(ndim):
    def imap(n):
        return (0,) * ndim
    return imap


def decoder_forward(x, params, *, kernel_size):
    """x: (N, hidden_dim, L) float32 in PyTorch NCL layout.  Returns (N, out_dim, L)."""
    N, C, L = x.shape
    if L != C:
        raise ValueError(
            "The reference module applies nn.LayerNorm(in_channels) to an NCL "
            f"tensor, which only type-checks when L == hidden_dim (got L={L}, "
            f"hidden_dim={C}).")

    # Flatten the module into a list of (params, K, dilation, gelu, block_end).
    stage_list = []
    for blk in params["blocks"]:
        stage_list.append((blk["conv1"], kernel_size, 1, True, False))
        stage_list.append((blk["conv2"], kernel_size, 4, True, True))
    stage_list.append((params["out"], 1, 1, False, False))

    in_arrays = [x]
    in_specs = [pl.BlockSpec((1, C, L), lambda n: (n, 0, 0))]
    stage_cfgs = []
    for (gamma, beta, w, b), K, dil, gelu, block_end in stage_list:
        cout, cin, kk = w.shape
        assert kk == K
        # (Cout, Cin, K) -> (Cout, K, Cin) -> (Cout, K*Cin): row order [k][ci],
        # matching the im2col concat order inside the kernel.
        w2 = jnp.transpose(w, (0, 2, 1)).reshape(cout, K * cin).astype(jnp.float32)
        g2 = gamma.reshape(1, -1).astype(jnp.float32)
        bt2 = beta.reshape(1, -1).astype(jnp.float32)
        b2 = b.reshape(-1, 1).astype(jnp.float32)
        for arr in (g2, bt2, w2, b2):
            in_arrays.append(arr)
            in_specs.append(pl.BlockSpec(arr.shape, _const_index_map(arr.ndim)))
        stage_cfgs.append((K, dil, gelu, block_end))

    out_dim = params["out"][2].shape[0]
    kernel = _make_decoder_kernel(tuple(stage_cfgs))

    return pl.pallas_call(
        kernel,
        out_shape=jax.ShapeDtypeStruct((N, out_dim, L), x.dtype),
        grid=(N,),
        in_specs=in_specs,
        out_specs=pl.BlockSpec((1, out_dim, L), lambda n: (n, 0, 0)),
        compiler_params=pltpu.CompilerParams(
            dimension_semantics=("parallel",)),   # N is independent -> v7x 2-TC split
    )(*in_arrays)


# --------------------- parameter construction (deterministic) ------------------


def init_conv1d_params(key, cin, cout, K, scale=0.1):
    k1, k2 = jax.random.split(key)
    gamma = jnp.ones((cin,), jnp.float32)    # LayerNorm default init
    beta = jnp.zeros((cin,), jnp.float32)
    w = scale * jax.random.normal(k1, (cout, cin, K), jnp.float32)
    b = scale * jax.random.normal(k2, (cout,), jnp.float32)
    return (gamma, beta, w, b)


def init_decoder_params(key, hidden_dim, out_dim, num_blocks, kernel_size):
    keys = jax.random.split(key, 2 * num_blocks + 1)
    blocks = []
    for i in range(num_blocks):
        blocks.append({
            "conv1": init_conv1d_params(keys[2 * i], hidden_dim, hidden_dim, kernel_size),
            "conv2": init_conv1d_params(keys[2 * i + 1], hidden_dim, hidden_dim, kernel_size),
        })
    out = init_conv1d_params(keys[-1], hidden_dim, out_dim, 1)
    return {"blocks": blocks, "out": out}


# -------------------------- pure-JAX reference (checking) ----------------------


def _ref_ln_conv(x, gamma, beta, w, b, *, dilation, gelu):
    # x: (N, C, L).  LayerNorm over the last axis, as the PyTorch module does on NCL.
    mean = x.mean(-1, keepdims=True)
    var = ((x - mean) ** 2).mean(-1, keepdims=True)
    xn = (x - mean) / jnp.sqrt(var + _LN_EPS) * gamma + beta
    K = w.shape[-1]
    pad = (K - 1) * dilation // 2
    y = lax.conv_general_dilated(
        xn, w, window_strides=(1,), padding=[(pad, pad)],
        rhs_dilation=(dilation,),
        dimension_numbers=("NCH", "OIH", "NCH"),
        precision=lax.Precision.HIGHEST)
    y = y + b[None, :, None]
    return _gelu_exact(y) if gelu else y


def _ref_decoder(x, params):
    h = x
    for blk in params["blocks"]:
        y = _ref_ln_conv(h, *blk["conv1"], dilation=1, gelu=True)
        h = h + _ref_ln_conv(y, *blk["conv2"], dilation=4, gelu=True)
    return _ref_ln_conv(h, *params["out"], dilation=1, gelu=False)


# ----------------------------------- main ---------------------------------------


if __name__ == "__main__":
    hidden_dim = 32
    out_dim = 8
    num_blocks = 2
    kernel_size = 3
    N = 2
    L = hidden_dim  # required: LayerNorm(in_channels) is applied to the last (length) axis

    key = jax.random.PRNGKey(0)
    kp, kx = jax.random.split(key)
    params = init_decoder_params(kp, hidden_dim, out_dim, num_blocks, kernel_size)
    x = jax.random.normal(kx, (N, hidden_dim, L), jnp.float32)

    out = decoder_forward(x, params, kernel_size=kernel_size)
    out = jax.block_until_ready(out)
    assert out.shape == (N, out_dim, L), out.shape
    assert jnp.all(jnp.isfinite(out))

    ref = _ref_decoder(x, params)
    err = float(jnp.max(jnp.abs(out - ref)))
    assert err < 1e-3, f"max abs err vs reference: {err}"

    print("KERNEL_OK")
</pallas_src>

<mosaic_0001>
module attributes {stable_mosaic.version = 11 : i64} {
  func.func @kernel(%arg0: i32, %arg1: memref<1x32x32xf32, #tpu.memory_space<vmem>>, %arg2: memref<1x32xf32, #tpu.memory_space<vmem>>, %arg3: memref<1x32xf32, #tpu.memory_space<vmem>>, %arg4: memref<32x96xf32, #tpu.memory_space<vmem>>, %arg5: memref<32x1xf32, #tpu.memory_space<vmem>>, %arg6: memref<1x32xf32, #tpu.memory_space<vmem>>, %arg7: memref<1x32xf32, #tpu.memory_space<vmem>>, %arg8: memref<32x96xf32, #tpu.memory_space<vmem>>, %arg9: memref<32x1xf32, #tpu.memory_space<vmem>>, %arg10: memref<1x32xf32, #tpu.memory_space<vmem>>, %arg11: memref<1x32xf32, #tpu.memory_space<vmem>>, %arg12: memref<32x96xf32, #tpu.memory_space<vmem>>, %arg13: memref<32x1xf32, #tpu.memory_space<vmem>>, %arg14: memref<1x32xf32, #tpu.memory_space<vmem>>, %arg15: memref<1x32xf32, #tpu.memory_space<vmem>>, %arg16: memref<32x96xf32, #tpu.memory_space<vmem>>, %arg17: memref<32x1xf32, #tpu.memory_space<vmem>>, %arg18: memref<1x32xf32, #tpu.memory_space<vmem>>, %arg19: memref<1x32xf32, #tpu.memory_space<vmem>>, %arg20: memref<8x32xf32, #tpu.memory_space<vmem>>, %arg21: memref<8x1xf32, #tpu.memory_space<vmem>>, %arg22: memref<1x8x32xf32, #tpu.memory_space<vmem>>) attributes {dimension_semantics = [#tpu.dimension_semantics<parallel>], iteration_bounds = array<i64: 2>, scalar_prefetch = 0 : i64, scratch_operands = 0 : i64, tpu.core_type = #tpu.core_type<tc>, window_params = [{transform_indices = @transform_0, window_bounds = array<i64: 1, 32, 32>}, {pipeline_mode = #tpu.pipeline_mode<synchronous>, transform_indices = @transform_1, window_bounds = array<i64: 1, 32>}, {pipeline_mode = #tpu.pipeline_mode<synchronous>, transform_indices = @transform_2, window_bounds = array<i64: 1, 32>}, {pipeline_mode = #tpu.pipeline_mode<synchronous>, transform_indices = @transform_3, window_bounds = array<i64: 32, 96>}, {pipeline_mode = #tpu.pipeline_mode<synchronous>, transform_indices = @transform_4, window_bounds = array<i64: 32, 1>}, {pipeline_mode = #tpu.pipeline_mode<synchronous>, transform_indices = @transform_5, window_bounds = array<i64: 1, 32>}, {pipeline_mode = #tpu.pipeline_mode<synchronous>, transform_indices = @transform_6, window_bounds = array<i64: 1, 32>}, {pipeline_mode = #tpu.pipeline_mode<synchronous>, transform_indices = @transform_7, window_bounds = array<i64: 32, 96>}, {pipeline_mode = #tpu.pipeline_mode<synchronous>, transform_indices = @transform_8, window_bounds = array<i64: 32, 1>}, {pipeline_mode = #tpu.pipeline_mode<synchronous>, transform_indices = @transform_9, window_bounds = array<i64: 1, 32>}, {pipeline_mode = #tpu.pipeline_mode<synchronous>, transform_indices = @transform_10, window_bounds = array<i64: 1, 32>}, {pipeline_mode = #tpu.pipeline_mode<synchronous>, transform_indices = @transform_11, window_bounds = array<i64: 32, 96>}, {pipeline_mode = #tpu.pipeline_mode<synchronous>, transform_indices = @transform_12, window_bounds = array<i64: 32, 1>}, {pipeline_mode = #tpu.pipeline_mode<synchronous>, transform_indices = @transform_13, window_bounds = array<i64: 1, 32>}, {pipeline_mode = #tpu.pipeline_mode<synchronous>, transform_indices = @transform_14, window_bounds = array<i64: 1, 32>}, {pipeline_mode = #tpu.pipeline_mode<synchronous>, transform_indices = @transform_15, window_bounds = array<i64: 32, 96>}, {pipeline_mode = #tpu.pipeline_mode<synchronous>, transform_indices = @transform_16, window_bounds = array<i64: 32, 1>}, {pipeline_mode = #tpu.pipeline_mode<synchronous>, transform_indices = @transform_17, window_bounds = array<i64: 1, 32>}, {pipeline_mode = #tpu.pipeline_mode<synchronous>, transform_indices = @transform_18, window_bounds = array<i64: 1, 32>}, {pipeline_mode = #tpu.pipeline_mode<synchronous>, transform_indices = @transform_19, window_bounds = array<i64: 8, 32>}, {pipeline_mode = #tpu.pipeline_mode<synchronous>, transform_indices = @transform_20, window_bounds = array<i64: 8, 1>}, {transform_indices = @transform_21, window_bounds = array<i64: 1, 8, 32>}]} {
    %c0 = arith.constant 0 : index
    %c0_0 = arith.constant 0 : index
    %c0_1 = arith.constant 0 : index
    %0 = vector.load %arg1[%c0, %c0_0, %c0_1] : memref<1x32x32xf32, #tpu.memory_space<vmem>>, vector<1x32x32xf32>
    %1 = vector.shape_cast %0 : vector<1x32x32xf32> to vector<32x32xf32>
    %c0_2 = arith.constant 0 : index
    %c0_3 = arith.constant 0 : index
    %2 = vector.load %arg2[%c0_2, %c0_3] : memref<1x32xf32, #tpu.memory_space<vmem>>, vector<1x32xf32>
    %c0_4 = arith.constant 0 : index
    %c0_5 = arith.constant 0 : index
    %3 = vector.load %arg3[%c0_4, %c0_5] : memref<1x32xf32, #tpu.memory_space<vmem>>, vector<1x32xf32>
    %c0_6 = arith.constant 0 : index
    %c0_7 = arith.constant 0 : index
    %4 = vector.load %arg4[%c0_6, %c0_7] : memref<32x96xf32, #tpu.memory_space<vmem>>, vector<32x96xf32>
    %c0_8 = arith.constant 0 : index
    %c0_9 = arith.constant 0 : index
    %5 = vector.load %arg5[%c0_8, %c0_9] : memref<32x1xf32, #tpu.memory_space<vmem>>, vector<32x1xf32>
    %cst = arith.constant dense<0.000000e+00> : vector<32xf32>
    %6 = vector.multi_reduction <add>, %1, %cst [1] : vector<32x32xf32> to vector<32xf32>
    %7 = vector.shape_cast %6 : vector<32xf32> to vector<32x1xf32>
    %cst_10 = arith.constant 3.200000e+01 : f32
    %8 = vector.broadcast %cst_10 : f32 to vector<32x1xf32>
    %9 = arith.divf %7, %8 : vector<32x1xf32>
    %10 = vector.broadcast %9 : vector<32x1xf32> to vector<32x32xf32>
    %11 = arith.subf %1, %10 : vector<32x32xf32>
    %12 = arith.mulf %11, %11 : vector<32x32xf32>
    %cst_11 = arith.constant dense<0.000000e+00> : vector<32xf32>
    %13 = vector.multi_reduction <add>, %12, %cst_11 [1] : vector<32x32xf32> to vector<32xf32>
    %14 = vector.shape_cast %13 : vector<32xf32> to vector<32x1xf32>
    %cst_12 = arith.constant 3.200000e+01 : f32
    %15 = vector.broadcast %cst_12 : f32 to vector<32x1xf32>
    %16 = arith.divf %14, %15 : vector<32x1xf32>
    %cst_13 = arith.constant 9.99999974E-6 : f32
    %17 = vector.broadcast %cst_13 : f32 to vector<32x1xf32>
    %18 = arith.addf %16, %17 : vector<32x1xf32>
    %19 = math.rsqrt %18 : vector<32x1xf32>
    %20 = vector.broadcast %19 : vector<32x1xf32> to vector<32x32xf32>
    %21 = arith.mulf %11, %20 : vector<32x32xf32>
    %22 = vector.broadcast %2 : vector<1x32xf32> to vector<32x32xf32>
    %23 = arith.mulf %21, %22 : vector<32x32xf32>
    %24 = vector.broadcast %3 : vector<1x32xf32> to vector<32x32xf32>
    %25 = arith.addf %23, %24 : vector<32x32xf32>
    %cst_14 = arith.constant 0.000000e+00 : f32
    %26 = vector.broadcast %cst_14 : f32 to vector<32x1xf32>
    %27 = tpu.concatenate %26, %25, %26 in 1 : vector<32x1xf32>, vector<32x32xf32>, vector<32x1xf32> -> vector<32x34xf32>
    %28 = vector.extract_strided_slice %27 {offsets = [0, 0], sizes = [32, 32], strides = [1, 1]} : vector<32x34xf32> to vector<32x32xf32>
    %29 = vector.extract_strided_slice %27 {offsets = [0, 1], sizes = [32, 32], strides = [1, 1]} : vector<32x34xf32> to vector<32x32xf32>
    %30 = vector.extract_strided_slice %27 {offsets = [0, 2], sizes = [32, 32], strides = [1, 1]} : vector<32x34xf32> to vector<32x32xf32>
    %31 = tpu.concatenate %28, %29, %30 in 0 : vector<32x32xf32>, vector<32x32xf32>, vector<32x32xf32> -> vector<96x32xf32>
    %cst_15 = arith.constant dense<0.000000e+00> : vector<32x32xf32>
    %32 = tpu.matmul %4, %31, %cst_15 {dimension_numbers = #tpu.dot_dimension_numbers<[1], [0], [0], [1], [0, 0, 1, 1], [], []>} : vector<32x96xf32>, vector<96x32xf32>, vector<32x32xf32> -> vector<32x32xf32>
    %33 = vector.broadcast %5 : vector<32x1xf32> to vector<32x32xf32>
    %34 = arith.addf %32, %33 : vector<32x32xf32>
    %cst_16 = arith.constant 5.000000e-01 : f32
    %35 = vector.broadcast %cst_16 : f32 to vector<32x32xf32>
    %36 = arith.mulf %35, %34 : vector<32x32xf32>
    %cst_17 = arith.constant 0.707106769 : f32
    %37 = vector.broadcast %cst_17 : f32 to vector<32x32xf32>
    %38 = arith.mulf %34, %37 : vector<32x32xf32>
    %39 = math.erf %38 : vector<32x32xf32>
    %cst_18 = arith.constant 1.000000e+00 : f32
    %40 = vector.broadcast %cst_18 : f32 to vector<32x32xf32>
    %41 = arith.addf %40, %39 : vector<32x32xf32>
    %42 = arith.mulf %36, %41 : vector<32x32xf32>
    %c0_19 = arith.constant 0 : index
    %c0_20 = arith.constant 0 : index
    %43 = vector.load %arg6[%c0_19, %c0_20] : memref<1x32xf32, #tpu.memory_space<vmem>>, vector<1x32xf32>
    %c0_21 = arith.constant 0 : index
    %c0_22 = arith.constant 0 : index
    %44 = vector.load %arg7[%c0_21, %c0_22] : memref<1x32xf32, #tpu.memory_space<vmem>>, vector<1x32xf32>
    %c0_23 = arith.constant 0 : index
    %c0_24 = arith.constant 0 : index
    %45 = vector.load %arg8[%c0_23, %c0_24] : memref<32x96xf32, #tpu.memory_space<vmem>>, vector<32x96xf32>
    %c0_25 = arith.constant 0 : index
    %c0_26 = arith.constant 0 : index
    %46 = vector.load %arg9[%c0_25, %c0_26] : memref<32x1xf32, #tpu.memory_space<vmem>>, vector<32x1xf32>
    %cst_27 = arith.constant dense<0.000000e+00> : vector<32xf32>
    %47 = vector.multi_reduction <add>, %42, %cst_27 [1] : vector<32x32xf32> to vector<32xf32>
    %48 = vector.shape_cast %47 : vector<32xf32> to vector<32x1xf32>
    %cst_28 = arith.constant 3.200000e+01 : f32
    %49 = vector.broadcast %cst_28 : f32 to vector<32x1xf32>
    %50 = arith.divf %48, %49 : vector<32x1xf32>
    %51 = vector.broadcast %50 : vector<32x1xf32> to vector<32x32xf32>
    %52 = arith.subf %42, %51 : vector<32x32xf32>
    %53 = arith.mulf %52, %52 : vector<32x32xf32>
    %cst_29 = arith.constant dense<0.000000e+00> : vector<32xf32>
    %54 = vector.multi_reduction <add>, %53, %cst_29 [1] : vector<32x32xf32> to vector<32xf32>
    %55 = vector.shape_cast %54 : vector<32xf32> to vector<32x1xf32>
    %cst_30 = arith.constant 3.200000e+01 : f32
    %56 = vector.broadcast %cst_30 : f32 to vector<32x1xf32>
    %57 = arith.divf %55, %56 : vector<32x1xf32>
    %cst_31 = arith.constant 9.99999974E-6 : f32
    %58 = vector.broadcast %cst_31 : f32 to vector<32x1xf32>
    %59 = arith.addf %57, %58 : vector<32x1xf32>
    %60 = math.rsqrt %59 : vector<32x1xf32>
    %61 = vector.broadcast %60 : vector<32x1xf32> to vector<32x32xf32>
    %62 = arith.mulf %52, %61 : vector<32x32xf32>
    %63 = vector.broadcast %43 : vector<1x32xf32> to vector<32x32xf32>
    %64 = arith.mulf %62, %63 : vector<32x32xf32>
    %65 = vector.broadcast %44 : vector<1x32xf32> to vector<32x32xf32>
    %66 = arith.addf %64, %65 : vector<32x32xf32>
    %cst_32 = arith.constant 0.000000e+00 : f32
    %67 = vector.broadcast %cst_32 : f32 to vector<32x4xf32>
    %68 = tpu.concatenate %67, %66, %67 in 1 : vector<32x4xf32>, vector<32x32xf32>, vector<32x4xf32> -> vector<32x40xf32>
    %69 = vector.extract_strided_slice %68 {offsets = [0, 0], sizes = [32, 32], strides = [1, 1]} : vector<32x40xf32> to vector<32x32xf32>
    %70 = vector.extract_strided_slice %68 {offsets = [0, 4], sizes = [32, 32], strides = [1, 1]} : vector<32x40xf32> to vector<32x32xf32>
    %71 = vector.extract_strided_slice %68 {offsets = [0, 8], sizes = [32, 32], strides = [1, 1]} : vector<32x40xf32> to vector<32x32xf32>
    %72 = tpu.concatenate %69, %70, %71 in 0 : vector<32x32xf32>, vector<32x32xf32>, vector<32x32xf32> -> vector<96x32xf32>
    %cst_33 = arith.constant dense<0.000000e+00> : vector<32x32xf32>
    %73 = tpu.matmul %45, %72, %cst_33 {dimension_numbers = #tpu.dot_dimension_numbers<[1], [0], [0], [1], [0, 0, 1, 1], [], []>} : vector<32x96xf32>, vector<96x32xf32>, vector<32x32xf32> -> vector<32x32xf32>
    %74 = vector.broadcast %46 : vector<32x1xf32> to vector<32x32xf32>
    %75 = arith.addf %73, %74 : vector<32x32xf32>
    %cst_34 = arith.constant 5.000000e-01 : f32
    %76 = vector.broadcast %cst_34 : f32 to vector<32x32xf32>
    %77 = arith.mulf %76, %75 : vector<32x32xf32>
    %cst_35 = arith.constant 0.707106769 : f32
    %78 = vector.broadcast %cst_35 : f32 to vector<32x32xf32>
    %79 = arith.mulf %75, %78 : vector<32x32xf32>
    %80 = math.erf %79 : vector<32x32xf32>
    %cst_36 = arith.constant 1.000000e+00 : f32
    %81 = vector.broadcast %cst_36 : f32 to vector<32x32xf32>
    %82 = arith.addf %81, %80 : vector<32x32xf32>
    %83 = arith.mulf %77, %82 : vector<32x32xf32>
    %84 = arith.addf %83, %1 : vector<32x32xf32>
    %c0_37 = arith.constant 0 : index
    %c0_38 = arith.constant 0 : index
    %85 = vector.load %arg10[%c0_37, %c0_38] : memref<1x32xf32, #tpu.memory_space<vmem>>, vector<1x32xf32>
    %c0_39 = arith.constant 0 : index
    %c0_40 = arith.constant 0 : index
    %86 = vector.load %arg11[%c0_39, %c0_40] : memref<1x32xf32, #tpu.memory_space<vmem>>, vector<1x32xf32>
    %c0_41 = arith.constant 0 : index
    %c0_42 = arith.constant 0 : index
    %87 = vector.load %arg12[%c0_41, %c0_42] : memref<32x96xf32, #tpu.memory_space<vmem>>, vector<32x96xf32>
    %c0_43 = arith.constant 0 : index
    %c0_44 = arith.constant 0 : index
    %88 = vector.load %arg13[%c0_43, %c0_44] : memref<32x1xf32, #tpu.memory_space<vmem>>, vector<32x1xf32>
    %cst_45 = arith.constant dense<0.000000e+00> : vector<32xf32>
    %89 = vector.multi_reduction <add>, %84, %cst_45 [1] : vector<32x32xf32> to vector<32xf32>
    %90 = vector.shape_cast %89 : vector<32xf32> to vector<32x1xf32>
    %cst_46 = arith.constant 3.200000e+01 : f32
    %91 = vector.broadcast %cst_46 : f32 to vector<32x1xf32>
    %92 = arith.divf %90, %91 : vector<32x1xf32>
    %93 = vector.broadcast %92 : vector<32x1xf32> to vector<32x32xf32>
    %94 = arith.subf %84, %93 : vector<32x32xf32>
    %95 = arith.mulf %94, %94 : vector<32x32xf32>
    %cst_47 = arith.constant dense<0.000000e+00> : vector<32xf32>
    %96 = vector.multi_reduction <add>, %95, %cst_47 [1] : vector<32x32xf32> to vector<32xf32>
    %97 = vector.shape_cast %96 : vector<32xf32> to vector<32x1xf32>
    %cst_48 = arith.constant 3.200000e+01 : f32
    %98 = vector.broadcast %cst_48 : f32 to vector<32x1xf32>
    %99 = arith.divf %97, %98 : vector<32x1xf32>
    %cst_49 = arith.constant 9.99999974E-6 : f32
    %100 = vector.broadcast %cst_49 : f32 to vector<32x1xf32>
    %101 = arith.addf %99, %100 : vector<32x1xf32>
    %102 = math.rsqrt %101 : vector<32x1xf32>
    %103 = vector.broadcast %102 : vector<32x1xf32> to vector<32x32xf32>
    %104 = arith.mulf %94, %103 : vector<32x32xf32>
    %105 = vector.broadcast %85 : vector<1x32xf32> to vector<32x32xf32>
    %106 = arith.mulf %104, %105 : vector<32x32xf32>
    %107 = vector.broadcast %86 : vector<1x32xf32> to vector<32x32xf32>
    %108 = arith.addf %106, %107 : vector<32x32xf32>
    %cst_50 = arith.constant 0.000000e+00 : f32
    %109 = vector.broadcast %cst_50 : f32 to vector<32x1xf32>
    %110 = tpu.concatenate %109, %108, %109 in 1 : vector<32x1xf32>, vector<32x32xf32>, vector<32x1xf32> -> vector<32x34xf32>
    %111 = vector.extract_strided_slice %110 {offsets = [0, 0], sizes = [32, 32], strides = [1, 1]} : vector<32x34xf32> to vector<32x32xf32>
    %112 = vector.extract_strided_slice %110 {offsets = [0, 1], sizes = [32, 32], strides = [1, 1]} : vector<32x34xf32> to vector<32x32xf32>
    %113 = vector.extract_strided_slice %110 {offsets = [0, 2], sizes = [32, 32], strides = [1, 1]} : vector<32x34xf32> to vector<32x32xf32>
    %114 = tpu.concatenate %111, %112, %113 in 0 : vector<32x32xf32>, vector<32x32xf32>, vector<32x32xf32> -> vector<96x32xf32>
    %cst_51 = arith.constant dense<0.000000e+00> : vector<32x32xf32>
    %115 = tpu.matmul %87, %114, %cst_51 {dimension_numbers = #tpu.dot_dimension_numbers<[1], [0], [0], [1], [0, 0, 1, 1], [], []>} : vector<32x96xf32>, vector<96x32xf32>, vector<32x32xf32> -> vector<32x32xf32>
    %116 = vector.broadcast %88 : vector<32x1xf32> to vector<32x32xf32>
    %117 = arith.addf %115, %116 : vector<32x32xf32>
    %cst_52 = arith.constant 5.000000e-01 : f32
    %118 = vector.broadcast %cst_52 : f32 to vector<32x32xf32>
    %119 = arith.mulf %118, %117 : vector<32x32xf32>
    %cst_53 = arith.constant 0.707106769 : f32
    %120 = vector.broadcast %cst_53 : f32 to vector<32x32xf32>
    %121 = arith.mulf %117, %120 : vector<32x32xf32>
    %122 = math.erf %121 : vector<32x32xf32>
    %cst_54 = arith.constant 1.000000e+00 : f32
    %123 = vector.broadcast %cst_54 : f32 to vector<32x32xf32>
    %124 = arith.addf %123, %122 : vector<32x32xf32>
    %125 = arith.mulf %119, %124 : vector<32x32xf32>
    %c0_55 = arith.constant 0 : index
    %c0_56 = arith.constant 0 : index
    %126 = vector.load %arg14[%c0_55, %c0_56] : memref<1x32xf32, #tpu.memory_space<vmem>>, vector<1x32xf32>
    %c0_57 = arith.constant 0 : index
    %c0_58 = arith.constant 0 : index
    %127 = vector.load %arg15[%c0_57, %c0_58] : memref<1x32xf32, #tpu.memory_space<vmem>>, vector<1x32xf32>
    %c0_59 = arith.constant 0 : index
    %c0_60 = arith.constant 0 : index
    %128 = vector.load %arg16[%c0_59, %c0_60] : memref<32x96xf32, #tpu.memory_space<vmem>>, vector<32x96xf32>
    %c0_61 = arith.constant 0 : index
    %c0_62 = arith.constant 0 : index
    %129 = vector.load %arg17[%c0_61, %c0_62] : memref<32x1xf32, #tpu.memory_space<vmem>>, vector<32x1xf32>
    %cst_63 = arith.constant dense<0.000000e+00> : vector<32xf32>
    %130 = vector.multi_reduction <add>, %125, %cst_63 [1] : vector<32x32xf32> to vector<32xf32>
    %131 = vector.shape_cast %130 : vector<32xf32> to vector<32x1xf32>
    %cst_64 = arith.constant 3.200000e+01 : f32
    %132 = vector.broadcast %cst_64 : f32 to vector<32x1xf32>
    %133 = arith.divf %131, %132 : vector<32x1xf32>
    %134 = vector.broadcast %133 : vector<32x1xf32> to vector<32x32xf32>
    %135 = arith.subf %125, %134 : vector<32x32xf32>
    %136 = arith.mulf %135, %135 : vector<32x32xf32>
    %cst_65 = arith.constant dense<0.000000e+00> : vector<32xf32>
    %137 = vector.multi_reduction <add>, %136, %cst_65 [1] : vector<32x32xf32> to vector<32xf32>
    %138 = vector.shape_cast %137 : vector<32xf32> to vector<32x1xf32>
    %cst_66 = arith.constant 3.200000e+01 : f32
    %139 = vector.broadcast %cst_66 : f32 to vector<32x1xf32>
    %140 = arith.divf %138, %139 : vector<32x1xf32>
    %cst_67 = arith.constant 9.99999974E-6 : f32
    %141 = vector.broadcast %cst_67 : f32 to vector<32x1xf32>
    %142 = arith.addf %140, %141 : vector<32x1xf32>
    %143 = math.rsqrt %142 : vector<32x1xf32>
    %144 = vector.broadcast %143 : vector<32x1xf32> to vector<32x32xf32>
    %145 = arith.mulf %135, %144 : vector<32x32xf32>
    %146 = vector.broadcast %126 : vector<1x32xf32> to vector<32x32xf32>
    %147 = arith.mulf %145, %146 : vector<32x32xf32>
    %148 = vector.broadcast %127 : vector<1x32xf32> to vector<32x32xf32>
    %149 = arith.addf %147, %148 : vector<32x32xf32>
    %cst_68 = arith.constant 0.000000e+00 : f32
    %150 = vector.broadcast %cst_68 : f32 to vector<32x4xf32>
    %151 = tpu.concatenate %150, %149, %150 in 1 : vector<32x4xf32>, vector<32x32xf32>, vector<32x4xf32> -> vector<32x40xf32>
    %152 = vector.extract_strided_slice %151 {offsets = [0, 0], sizes = [32, 32], strides = [1, 1]} : vector<32x40xf32> to vector<32x32xf32>
    %153 = vector.extract_strided_slice %151 {offsets = [0, 4], sizes = [32, 32], strides = [1, 1]} : vector<32x40xf32> to vector<32x32xf32>
    %154 = vector.extract_strided_slice %151 {offsets = [0, 8], sizes = [32, 32], strides = [1, 1]} : vector<32x40xf32> to vector<32x32xf32>
    %155 = tpu.concatenate %152, %153, %154 in 0 : vector<32x32xf32>, vector<32x32xf32>, vector<32x32xf32> -> vector<96x32xf32>
    %cst_69 = arith.constant dense<0.000000e+00> : vector<32x32xf32>
    %156 = tpu.matmul %128, %155, %cst_69 {dimension_numbers = #tpu.dot_dimension_numbers<[1], [0], [0], [1], [0, 0, 1, 1], [], []>} : vector<32x96xf32>, vector<96x32xf32>, vector<32x32xf32> -> vector<32x32xf32>
    %157 = vector.broadcast %129 : vector<32x1xf32> to vector<32x32xf32>
    %158 = arith.addf %156, %157 : vector<32x32xf32>
    %cst_70 = arith.constant 5.000000e-01 : f32
    %159 = vector.broadcast %cst_70 : f32 to vector<32x32xf32>
    %160 = arith.mulf %159, %158 : vector<32x32xf32>
    %cst_71 = arith.constant 0.707106769 : f32
    %161 = vector.broadcast %cst_71 : f32 to vector<32x32xf32>
    %162 = arith.mulf %158, %161 : vector<32x32xf32>
    %163 = math.erf %162 : vector<32x32xf32>
    %cst_72 = arith.constant 1.000000e+00 : f32
    %164 = vector.broadcast %cst_72 : f32 to vector<32x32xf32>
    %165 = arith.addf %164, %163 : vector<32x32xf32>
    %166 = arith.mulf %160, %165 : vector<32x32xf32>
    %167 = arith.addf %166, %84 : vector<32x32xf32>
    %c0_73 = arith.constant 0 : index
    %c0_74 = arith.constant 0 : index
    %168 = vector.load %arg18[%c0_73, %c0_74] : memref<1x32xf32, #tpu.memory_space<vmem>>, vector<1x32xf32>
    %c0_75 = arith.constant 0 : index
    %c0_76 = arith.constant 0 : index
    %169 = vector.load %arg19[%c0_75, %c0_76] : memref<1x32xf32, #tpu.memory_space<vmem>>, vector<1x32xf32>
    %c0_77 = arith.constant 0 : index
    %c0_78 = arith.constant 0 : index
    %170 = vector.load %arg20[%c0_77, %c0_78] : memref<8x32xf32, #tpu.memory_space<vmem>>, vector<8x32xf32>
    %c0_79 = arith.constant 0 : index
    %c0_80 = arith.constant 0 : index
    %171 = vector.load %arg21[%c0_79, %c0_80] : memref<8x1xf32, #tpu.memory_space<vmem>>, vector<8x1xf32>
    %cst_81 = arith.constant dense<0.000000e+00> : vector<32xf32>
    %172 = vector.multi_reduction <add>, %167, %cst_81 [1] : vector<32x32xf32> to vector<32xf32>
    %173 = vector.shape_cast %172 : vector<32xf32> to vector<32x1xf32>
    %cst_82 = arith.constant 3.200000e+01 : f32
    %174 = vector.broadcast %cst_82 : f32 to vector<32x1xf32>
    %175 = arith.divf %173, %174 : vector<32x1xf32>
    %176 = vector.broadcast %175 : vector<32x1xf32> to vector<32x32xf32>
    %177 = arith.subf %167, %176 : vector<32x32xf32>
    %178 = arith.mulf %177, %177 : vector<32x32xf32>
    %cst_83 = arith.constant dense<0.000000e+00> : vector<32xf32>
    %179 = vector.multi_reduction <add>, %178, %cst_83 [1] : vector<32x32xf32> to vector<32xf32>
    %180 = vector.shape_cast %179 : vector<32xf32> to vector<32x1xf32>
    %cst_84 = arith.constant 3.200000e+01 : f32
    %181 = vector.broadcast %cst_84 : f32 to vector<32x1xf32>
    %182 = arith.divf %180, %181 : vector<32x1xf32>
    %cst_85 = arith.constant 9.99999974E-6 : f32
    %183 = vector.broadcast %cst_85 : f32 to vector<32x1xf32>
    %184 = arith.addf %182, %183 : vector<32x1xf32>
    %185 = math.rsqrt %184 : vector<32x1xf32>
    %186 = vector.broadcast %185 : vector<32x1xf32> to vector<32x32xf32>
    %187 = arith.mulf %177, %186 : vector<32x32xf32>
    %188 = vector.broadcast %168 : vector<1x32xf32> to vector<32x32xf32>
    %189 = arith.mulf %187, %188 : vector<32x32xf32>
    %190 = vector.broadcast %169 : vector<1x32xf32> to vector<32x32xf32>
    %191 = arith.addf %189, %190 : vector<32x32xf32>
    %cst_86 = arith.constant dense<0.000000e+00> : vector<8x32xf32>
    %192 = tpu.matmul %170, %191, %cst_86 {dimension_numbers = #tpu.dot_dimension_numbers<[1], [0], [0], [1], [0, 0, 1, 1], [], []>} : vector<8x32xf32>, vector<32x32xf32>, vector<8x32xf32> -> vector<8x32xf32>
    %193 = vector.broadcast %171 : vector<8x1xf32> to vector<8x32xf32>
    %194 = arith.addf %192, %193 : vector<8x32xf32>
    %c0_87 = arith.constant 0 : index
    %c0_88 = arith.constant 0 : index
    %c0_89 = arith.constant 0 : index
    %195 = vector.load %arg22[%c0_87, %c0_88, %c0_89] : memref<1x8x32xf32, #tpu.memory_space<vmem>>, vector<1x8x32xf32>
    %196 = vector.shape_cast %195 : vector<1x8x32xf32> to vector<8x32xf32>
    %197 = vector.shape_cast %194 : vector<8x32xf32> to vector<1x8x32xf32>
    tpu.vector_store %arg22[%c0_87, %c0_88, %c0_89], %197 {strides = array<i32>} : memref<1x8x32xf32, #tpu.memory_space<vmem>>, vector<1x8x32xf32>,
    return
  }
  func.func @transform_0(%arg0: i32) -> (i32, i32, i32) {
    %c0_i32 = arith.constant 0 : i32
    %c0_i32_0 = arith.constant 0 : i32
    %c0_i32_1 = arith.constant 0 : i32
    return %arg0, %c0_i32, %c0_i32_0 : i32, i32, i32
  }
  func.func @transform_1(%arg0: i32) -> (i32, i32) {
    %c0_i32 = arith.constant 0 : i32
    %c0_i32_0 = arith.constant 0 : i32
    %c0_i32_1 = arith.constant 0 : i32
    return %c0_i32, %c0_i32_0 : i32, i32
  }
  func.func @transform_2(%arg0: i32) -> (i32, i32) {
    %c0_i32 = arith.constant 0 : i32
    %c0_i32_0 = arith.constant 0 : i32
    %c0_i32_1 = arith.constant 0 : i32
    return %c0_i32, %c0_i32_0 : i32, i32
  }
  func.func @transform_3(%arg0: i32) -> (i32, i32) {
    %c0_i32 = arith.constant 0 : i32
    %c0_i32_0 = arith.constant 0 : i32
    %c0_i32_1 = arith.constant 0 : i32
    return %c0_i32, %c0_i32_0 : i32, i32
  }
  func.func @transform_4(%arg0: i32) -> (i32, i32) {
    %c0_i32 = arith.constant 0 : i32
    %c0_i32_0 = arith.constant 0 : i32
    %c0_i32_1 = arith.constant 0 : i32
    return %c0_i32, %c0_i32_0 : i32, i32
  }
  func.func @transform_5(%arg0: i32) -> (i32, i32) {
    %c0_i32 = arith.constant 0 : i32
    %c0_i32_0 = arith.constant 0 : i32
    %c0_i32_1 = arith.constant 0 : i32
    return %c0_i32, %c0_i32_0 : i32, i32
  }
  func.func @transform_6(%arg0: i32) -> (i32, i32) {
    %c0_i32 = arith.constant 0 : i32
    %c0_i32_0 = arith.constant 0 : i32
    %c0_i32_1 = arith.constant 0 : i32
    return %c0_i32, %c0_i32_0 : i32, i32
  }
  func.func @transform_7(%arg0: i32) -> (i32, i32) {
    %c0_i32 = arith.constant 0 : i32
    %c0_i32_0 = arith.constant 0 : i32
    %c0_i32_1 = arith.constant 0 : i32
    return %c0_i32, %c0_i32_0 : i32, i32
  }
  func.func @transform_8(%arg0: i32) -> (i32, i32) {
    %c0_i32 = arith.constant 0 : i32
    %c0_i32_0 = arith.constant 0 : i32
    %c0_i32_1 = arith.constant 0 : i32
    return %c0_i32, %c0_i32_0 : i32, i32
  }
  func.func @transform_9(%arg0: i32) -> (i32, i32) {
    %c0_i32 = arith.constant 0 : i32
    %c0_i32_0 = arith.constant 0 : i32
    %c0_i32_1 = arith.constant 0 : i32
    return %c0_i32, %c0_i32_0 : i32, i32
  }
  func.func @transform_10(%arg0: i32) -> (i32, i32) {
    %c0_i32 = arith.constant 0 : i32
    %c0_i32_0 = arith.constant 0 : i32
    %c0_i32_1 = arith.constant 0 : i32
    return %c0_i32, %c0_i32_0 : i32, i32
  }
  func.func @transform_11(%arg0: i32) -> (i32, i32) {
    %c0_i32 = arith.constant 0 : i32
    %c0_i32_0 = arith.constant 0 : i32
    %c0_i32_1 = arith.constant 0 : i32
    return %c0_i32, %c0_i32_0 : i32, i32
  }
  func.func @transform_12(%arg0: i32) -> (i32, i32) {
    %c0_i32 = arith.constant 0 : i32
    %c0_i32_0 = arith.constant 0 : i32
    %c0_i32_1 = arith.constant 0 : i32
    return %c0_i32, %c0_i32_0 : i32, i32
  }
  func.func @transform_13(%arg0: i32) -> (i32, i32) {
    %c0_i32 = arith.constant 0 : i32
    %c0_i32_0 = arith.constant 0 : i32
    %c0_i32_1 = arith.constant 0 : i32
    return %c0_i32, %c0_i32_0 : i32, i32
  }
  func.func @transform_14(%arg0: i32) -> (i32, i32) {
    %c0_i32 = arith.constant 0 : i32
    %c0_i32_0 = arith.constant 0 : i32
    %c0_i32_1 = arith.constant 0 : i32
    return %c0_i32, %c0_i32_0 : i32, i32
  }
  func.func @transform_15(%arg0: i32) -> (i32, i32) {
    %c0_i32 = arith.constant 0 : i32
    %c0_i32_0 = arith.constant 0 : i32
    %c0_i32_1 = arith.constant 0 : i32
    return %c0_i32, %c0_i32_0 : i32, i32
  }
  func.func @transform_16(%arg0: i32) -> (i32, i32) {
    %c0_i32 = arith.constant 0 : i32
    %c0_i32_0 = arith.constant 0 : i32
    %c0_i32_1 = arith.constant 0 : i32
    return %c0_i32, %c0_i32_0 : i32, i32
  }
  func.func @transform_17(%arg0: i32) -> (i32, i32) {
    %c0_i32 = arith.constant 0 : i32
    %c0_i32_0 = arith.constant 0 : i32
    %c0_i32_1 = arith.constant 0 : i32
    return %c0_i32, %c0_i32_0 : i32, i32
  }
  func.func @transform_18(%arg0: i32) -> (i32, i32) {
    %c0_i32 = arith.constant 0 : i32
    %c0_i32_0 = arith.constant 0 : i32
    %c0_i32_1 = arith.constant 0 : i32
    return %c0_i32, %c0_i32_0 : i32, i32
  }
  func.func @transform_19(%arg0: i32) -> (i32, i32) {
    %c0_i32 = arith.constant 0 : i32
    %c0_i32_0 = arith.constant 0 : i32
    %c0_i32_1 = arith.constant 0 : i32
    return %c0_i32, %c0_i32_0 : i32, i32
  }
  func.func @transform_20(%arg0: i32) -> (i32, i32) {
    %c0_i32 = arith.constant 0 : i32
    %c0_i32_0 = arith.constant 0 : i32
    %c0_i32_1 = arith.constant 0 : i32
    return %c0_i32, %c0_i32_0 : i32, i32
  }
  func.func @transform_21(%arg0: i32) -> (i32, i32, i32) {
    %c0_i32 = arith.constant 0 : i32
    %c0_i32_0 = arith.constant 0 : i32
    %c0_i32_1 = arith.constant 0 : i32
    return %arg0, %c0_i32, %c0_i32_0 : i32, i32, i32
  }
}

</mosaic_0001>

<llo_original>
// kernel: tpu_custom_call.1
$region0: #{tpu_custom_call.1}
  #allocation0 [shape = 'u32[]', space=smem, size = 0x4, offset = 0x4, fixed_abs, tag = 'smem constant byte address 0x4 - core index']
  #allocation1 [shape = 'u32[144,128]{1,0:T(1,128)}', space=vmem, size = 0x12000, scoped, tag = 'internal scratch']
  %s0 = inlined_call_operand.vmem [shape: f32[2,32,32], index: 0, kind: input, shape index: {}]
  %s1 = inlined_call_operand.hbm [shape: f32[1,32], index: 1, kind: input, shape index: {}]
  %s2 = inlined_call_operand.hbm [shape: f32[1,32], index: 2, kind: input, shape index: {}]
  %s3 = inlined_call_operand.vmem [shape: f32[32,96], index: 3, kind: input, shape index: {}]
  %s4 = inlined_call_operand.vmem [shape: f32[32,1], index: 4, kind: input, shape index: {}]
  %s5 = inlined_call_operand.hbm [shape: f32[1,32], index: 5, kind: input, shape index: {}]
  %s6 = inlined_call_operand.hbm [shape: f32[1,32], index: 6, kind: input, shape index: {}]
  %s7 = inlined_call_operand.vmem [shape: f32[32,96], index: 7, kind: input, shape index: {}]
  %s8 = inlined_call_operand.vmem [shape: f32[32,1], index: 8, kind: input, shape index: {}]
  %s9 = inlined_call_operand.hbm [shape: f32[1,32], index: 9, kind: input, shape index: {}]
  %s10 = inlined_call_operand.hbm [shape: f32[1,32], index: 10, kind: input, shape index: {}]
  %s11 = inlined_call_operand.vmem [shape: f32[32,96], index: 11, kind: input, shape index: {}]
  %s12 = inlined_call_operand.vmem [shape: f32[32,1], index: 12, kind: input, shape index: {}]
  %s13 = inlined_call_operand.hbm [shape: f32[1,32], index: 13, kind: input, shape index: {}]
  %s14 = inlined_call_operand.hbm [shape: f32[1,32], index: 14, kind: input, shape index: {}]
  %s15 = inlined_call_operand.hbm [shape: f32[32,96], index: 15, kind: input, shape index: {}]
  %s16 = inlined_call_operand.vmem [shape: f32[32,1], index: 16, kind: input, shape index: {}]
  %s17 = inlined_call_operand.vmem [shape: f32[1,32], index: 17, kind: input, shape index: {}]
  %s18 = inlined_call_operand.vmem [shape: f32[1,32], index: 18, kind: input, shape index: {}]
  %s19 = inlined_call_operand.vmem [shape: f32[8,32], index: 19, kind: input, shape index: {}]
  %s20 = inlined_call_operand.vmem [shape: f32[8,1], index: 20, kind: input, shape index: {}]
  %s21 = inlined_call_operand.hbm [shape: f32[2,8,32], index: 21, kind: output, shape index: {}]
  %s22 = sld [smem:[#allocation0]]
  $region153: #{tpu_custom_call.1} parent=0
    _
  %s24 = ssub.s32 1, %s22
  %s25 = scalar_select 0, %s24, %s22
  $region1: #{tpu_custom_call.1} parent=0
    #allocation2 [shape = 'u8[512]{0}', space=vmem, size = 0x400, scoped, tag = 'input window, operand 1, single buffered']
    #allocation3 [shape = 's32[2]{0}', space=sflag, size = 0x8, scoped, tag = 'scoped memory for tpu_custom_call.1']
    #allocation4 [shape = 's32[2]{0}', space=sflag, size = 0x8, scoped, tag = 'scoped memory for tpu_custom_call.1']
    #allocation5 [shape = 'u8[512]{0}', space=vmem, size = 0x400, scoped, tag = 'input window, operand 2, single buffered']
    #allocation6 [shape = 's32[1]{0}', space=sflag, size = 0x4, scoped, tag = 'scoped memory for tpu_custom_call.1']
    #allocation7 [shape = 'u8[512]{0}', space=vmem, size = 0x400, scoped, tag = 'input window, operand 5, single buffered']
    #allocation8 [shape = 'u8[512]{0}', space=vmem, size = 0x400, scoped, tag = 'input window, operand 6, single buffered']
    #allocation9 [shape = 's32[1]{0}', space=sflag, size = 0x4, scoped, tag = 'scoped memory for tpu_custom_call.1']
    #allocation10 [shape = 'u8[512]{0}', space=vmem, size = 0x400, scoped, tag = 'input window, operand 9, single buffered']
    #allocation11 [shape = 'u8[512]{0}', space=vmem, size = 0x400, scoped, tag = 'input window, operand 10, single buffered']
    #allocation12 [shape = 's32[1]{0}', space=sflag, size = 0x4, scoped, tag = 'scoped memory for tpu_custom_call.1']
    #allocation13 [shape = 'u8[512]{0}', space=vmem, size = 0x400, scoped, tag = 'input window, operand 13, single buffered']
    #allocation14 [shape = 'u8[512]{0}', space=vmem, size = 0x400, scoped, tag = 'input window, operand 14, single buffered']
    #allocation15 [shape = 's32[1]{0}', space=sflag, size = 0x4, scoped, tag = 'scoped memory for tpu_custom_call.1']
    #allocation16 [shape = 'u8[16384]{0}', space=vmem, size = 0x4000, scoped, tag = 'input window, operand 15, single buffered']
    #allocation17 [shape = 'u8[8192]{0}', space=vmem, size = 0x2000, scoped, tag = 'output window, operand 0']
    %26 = vsyncpa [#allocation3], 0
    %27 = vsyncpa [#allocation6], 0
    %28 = vsyncpa [#allocation9], 0
    %29 = vsyncpa [#allocation12], 0
    %30 = vsyncpa [#allocation15], 0
    %31 = vsyncpa [#allocation4], 0
    %s32 = scalar_lea.sflag [#allocation4], 1
    %33 = vsyncpa %s32, 0
    loop: start=0, step=1, limit=4
    $region2: #{tpu_custom_call.1} parent=1 // loop_pre_header
      _
    $region3: #{tpu_custom_call.1} parent=1 // loop_header
      %s35 = sphi 0, %s39
      %p36 = scmp.ge.s32.totalorder %s35, 4
      %s45 = sphi 0, %s47
      %s48 = sphi 0, %s45
      %s49 = sphi 0, %s48
      %s65 = sphi 0, %s49
      %s69 = sphi 0, %s69
      %s71 = sphi 0, %s69
      %s72 = sphi 0, %s71
      %s86 = sphi 0, %s72
      %s90 = sphi 0, %s90
      %s92 = sphi 0, %s90
      %s93 = sphi 0, %s92
      %s107 = sphi 0, %s93
      %s111 = sphi 0, %s111
      %s113 = sphi 0, %s111
      %s114 = sphi 0, %s113
      %s128 = sphi 0, %s114
      %s132 = sphi 0, %s132
      %s134 = sphi 0, %s132
      %s135 = sphi 0, %s134
      %s149 = sphi 0, %s135
      %s153 = sphi 0, %s153
      %s155 = sphi 0, %s153
      %s156 = sphi 0, %s155
      %s170 = sphi 0, %s156
      %s174 = sphi 0, %s174
      %s176 = sphi 0, %s174
      %s177 = sphi 0, %s176
      %s191 = sphi 0, %s177
      %s195 = sphi 0, %s195
      %s197 = sphi 0, %s195
      %s198 = sphi 0, %s197
      %s212 = sphi 0, %s198
      %s216 = sphi 0, %s216
      %s218 = sphi 0, %s216
      %s219 = sphi 0, %s218
      %s233 = sphi 0, %s219
      %s237 = sphi 0, %s237
      %s239 = sphi 0, %s237
      %s240 = sphi 0, %s239
      %s254 = sphi 0, %s240
      %s258 = sphi 0, %s258
      %s260 = sphi 0, %s258
      %s261 = sphi 0, %s260
      %s275 = sphi 0, %s261
      %s279 = sphi 0, %s279
      %s281 = sphi 0, %s279
      %s282 = sphi 0, %s281
      %s296 = sphi 0, %s282
      %s300 = sphi 0, %s300
      %s302 = sphi 0, %s300
      %s303 = sphi 0, %s302
      %s317 = sphi 0, %s303
      %s321 = sphi 0, %s321
      %s323 = sphi 0, %s321
      %s324 = sphi 0, %s323
      %s338 = sphi 0, %s324
      %s342 = sphi 0, %s342
      %s344 = sphi 0, %s342
      %s345 = sphi 0, %s344
      %s359 = sphi 0, %s345
      %s363 = sphi 0, %s363
      %s365 = sphi 0, %s363
      %s366 = sphi 0, %s365
      %s380 = sphi 0, %s366
      %s384 = sphi 0, %s384
      %s386 = sphi 0, %s384
      %s387 = sphi 0, %s386
      %s401 = sphi 0, %s387
      %s405 = sphi 0, %s405
      %s407 = sphi 0, %s405
      %s408 = sphi 0, %s407
      %s422 = sphi 0, %s408
      %s426 = sphi 0, %s426
      %s428 = sphi 0, %s426
      %s429 = sphi 0, %s428
      %s443 = sphi 0, %s429
      %s447 = sphi 0, %s447
      %s449 = sphi 0, %s447
      %s450 = sphi 0, %s449
      %s464 = sphi 0, %s450
      %s468 = sphi 0, %s468
      %s470 = sphi 0, %s468
      %s471 = sphi 0, %s470
      %s485 = sphi 0, %s471
      %s491 = sphi 0, %s493
      %s494 = sphi 0, %s491
      %s495 = sphi 0, %s494
      %s511 = sphi 0, %s495
    $region4: #{tpu_custom_call.1} parent=1 // loop_header_branch
      %38 = sbr.rel (%p36) target = $region8
    $region5: #{tpu_custom_call.1} parent=1 // loop_body
      %s40 = ssub.s32 %s35, 1
      %s41 = ssub.s32 %s35, 2
      %s42 = sadd.s32 %s35, 1
      %s43 = ssub.s32 %s35, %s42
      %p44 = scmp.eq.s32.totalorder %s43, 0
      %s46 = sadd.s32 %s45, 1
      %s47 = scalar_select %p44, %s45, %s46
      %p50 = pneg %p44
      %p51 = scmp.eq.s32.totalorder %s35, 1
      %p52 = por %p50, %p51
      %p53 = scmp.ne.s32.totalorder %s45, %s48
      %p54 = scmp.eq.s32.totalorder %s35, 0
      %p55 = por %p53, %p54
      %p56 = scmp.ne.s32.totalorder %s45, %s48
      %p57 = scmp.eq.s32.totalorder %s40, 1
      %p58 = por %p56, %p57
      %p59 = scmp.ne.s32.totalorder %s48, %s49
      %p60 = scmp.eq.s32.totalorder %s40, 0
      %p61 = por %p59, %p60
      %p62 = scmp.ne.s32.totalorder %s48, %s49
      %p63 = scmp.eq.s32.totalorder %s41, 1
      %p64 = por %p62, %p63
      %p66 = scmp.ne.s32.totalorder %s49, %s65
      %p67 = scmp.eq.s32.totalorder %s41, 0
      %p68 = por %p66, %p67
      %s70 = sadd.s32 %s69, 1
      %p73 = scmp.eq.s32.totalorder %s35, 1
      %p74 = scmp.ne.s32.totalorder %s69, %s71
      %p75 = scmp.eq.s32.totalorder %s35, 0
      %p76 = por %p74, %p75
      %p77 = scmp.ne.s32.totalorder %s69, %s71
      %p78 = scmp.eq.s32.totalorder %s40, 1
      %p79 = por %p77, %p78
      %p80 = scmp.ne.s32.totalorder %s71, %s72
      %p81 = scmp.eq.s32.totalorder %s40, 0
      %p82 = por %p80, %p81
      %p83 = scmp.ne.s32.totalorder %s71, %s72
      %p84 = scmp.eq.s32.totalorder %s41, 1
      %p85 = por %p83, %p84
      %p87 = scmp.ne.s32.totalorder %s72, %s86
      %p88 = scmp.eq.s32.totalorder %s41, 0
      %p89 = por %p87, %p88
      %s91 = sadd.s32 %s90, 1
      %p94 = scmp.eq.s32.totalorder %s35, 1
      %p95 = scmp.ne.s32.totalorder %s90, %s92
      %p96 = scmp.eq.s32.totalorder %s35, 0
      %p97 = por %p95, %p96
      %p98 = scmp.ne.s32.totalorder %s90, %s92
      %p99 = scmp.eq.s32.totalorder %s40, 1
      %p100 = por %p98, %p99
      %p101 = scmp.ne.s32.totalorder %s92, %s93
      %p102 = scmp.eq.s32.totalorder %s40, 0
      %p103 = por %p101, %p102
      %p104 = scmp.ne.s32.totalorder %s92, %s93
      %p105 = scmp.eq.s32.totalorder %s41, 1
      %p106 = por %p104, %p105
      %p108 = scmp.ne.s32.totalorder %s93, %s107
      %p109 = scmp.eq.s32.totalorder %s41, 0
      %p110 = por %p108, %p109
      %s112 = sadd.s32 %s111, 1
      %p115 = scmp.eq.s32.totalorder %s35, 1
      %p116 = scmp.ne.s32.totalorder %s111, %s113
      %p117 = scmp.eq.s32.totalorder %s35, 0
      %p118 = por %p116, %p117
      %p119 = scmp.ne.s32.totalorder %s111, %s113
      %p120 = scmp.eq.s32.totalorder %s40, 1
      %p121 = por %p119, %p120
      %p122 = scmp.ne.s32.totalorder %s113, %s114
      %p123 = scmp.eq.s32.totalorder %s40, 0
      %p124 = por %p122, %p123
      %p125 = scmp.ne.s32.totalorder %s113, %s114
      %p126 = scmp.eq.s32.totalorder %s41, 1
      %p127 = por %p125, %p126
      %p129 = scmp.ne.s32.totalorder %s114, %s128
      %p130 = scmp.eq.s32.totalorder %s41, 0
      %p131 = por %p129, %p130
      %s133 = sadd.s32 %s132, 1
      %p136 = scmp.eq.s32.totalorder %s35, 1
      %p137 = scmp.ne.s32.totalorder %s132, %s134
      %p138 = scmp.eq.s32.totalorder %s35, 0
      %p139 = por %p137, %p138
      %p140 = scmp.ne.s32.totalorder %s132, %s134
      %p141 = scmp.eq.s32.totalorder %s40, 1
      %p142 = por %p140, %p141
      %p143 = scmp.ne.s32.totalorder %s134, %s135
      %p144 = scmp.eq.s32.totalorder %s40, 0
      %p145 = por %p143, %p144
      %p146 = scmp.ne.s32.totalorder %s134, %s135
      %p147 = scmp.eq.s32.totalorder %s41, 1
      %p148 = por %p146, %p147
      %p150 = scmp.ne.s32.totalorder %s135, %s149
      %p151 = scmp.eq.s32.totalorder %s41, 0
      %p152 = por %p150, %p151
      %s154 = sadd.s32 %s153, 1
      %p157 = scmp.eq.s32.totalorder %s35, 1
      %p158 = scmp.ne.s32.totalorder %s153, %s155
      %p159 = scmp.eq.s32.totalorder %s35, 0
      %p160 = por %p158, %p159
      %p161 = scmp.ne.s32.totalorder %s153, %s155
      %p162 = scmp.eq.s32.totalorder %s40, 1
      %p163 = por %p161, %p162
      %p164 = scmp.ne.s32.totalorder %s155, %s156
      %p165 = scmp.eq.s32.totalorder %s40, 0
      %p166 = por %p164, %p165
      %p167 = scmp.ne.s32.totalorder %s155, %s156
      %p168 = scmp.eq.s32.totalorder %s41, 1
      %p169 = por %p167, %p168
      %p171 = scmp.ne.s32.totalorder %s156, %s170
      %p172 = scmp.eq.s32.totalorder %s41, 0
      %p173 = por %p171, %p172
      %s175 = sadd.s32 %s174, 1
      %p178 = scmp.eq.s32.totalorder %s35, 1
      %p179 = scmp.ne.s32.totalorder %s174, %s176
      %p180 = scmp.eq.s32.totalorder %s35, 0
      %p181 = por %p179, %p180
      %p182 = scmp.ne.s32.totalorder %s174, %s176
      %p183 = scmp.eq.s32.totalorder %s40, 1
      %p184 = por %p182, %p183
      %p185 = scmp.ne.s32.totalorder %s176, %s177
      %p186 = scmp.eq.s32.totalorder %s40, 0
      %p187 = por %p185, %p186
      %p188 = scmp.ne.s32.totalorder %s176, %s177
      %p189 = scmp.eq.s32.totalorder %s41, 1
      %p190 = por %p188, %p189
      %p192 = scmp.ne.s32.totalorder %s177, %s191
      %p193 = scmp.eq.s32.totalorder %s41, 0
      %p194 = por %p192, %p193
      %s196 = sadd.s32 %s195, 1
      %p199 = scmp.eq.s32.totalorder %s35, 1
      %p200 = scmp.ne.s32.totalorder %s195, %s197
      %p201 = scmp.eq.s32.totalorder %s35, 0
      %p202 = por %p200, %p201
      %p203 = scmp.ne.s32.totalorder %s195, %s197
      %p204 = scmp.eq.s32.totalorder %s40, 1
      %p205 = por %p203, %p204
      %p206 = scmp.ne.s32.totalorder %s197, %s198
      %p207 = scmp.eq.s32.totalorder %s40, 0
      %p208 = por %p206, %p207
      %p209 = scmp.ne.s32.totalorder %s197, %s198
      %p210 = scmp.eq.s32.totalorder %s41, 1
      %p211 = por %p209, %p210
      %p213 = scmp.ne.s32.totalorder %s198, %s212
      %p214 = scmp.eq.s32.totalorder %s41, 0
      %p215 = por %p213, %p214
      %s217 = sadd.s32 %s216, 1
      %p220 = scmp.eq.s32.totalorder %s35, 1
      %p221 = scmp.ne.s32.totalorder %s216, %s218
      %p222 = scmp.eq.s32.totalorder %s35, 0
      %p223 = por %p221, %p222
      %p224 = scmp.ne.s32.totalorder %s216, %s218
      %p225 = scmp.eq.s32.totalorder %s40, 1
      %p226 = por %p224, %p225
      %p227 = scmp.ne.s32.totalorder %s218, %s219
      %p228 = scmp.eq.s32.totalorder %s40, 0
      %p229 = por %p227, %p228
      %p230 = scmp.ne.s32.totalorder %s218, %s219
      %p231 = scmp.eq.s32.totalorder %s41, 1
      %p232 = por %p230, %p231
      %p234 = scmp.ne.s32.totalorder %s219, %s233
      %p235 = scmp.eq.s32.totalorder %s41, 0
      %p236 = por %p234, %p235
      %s238 = sadd.s32 %s237, 1
      %p241 = scmp.eq.s32.totalorder %s35, 1
      %p242 = scmp.ne.s32.totalorder %s237, %s239
      %p243 = scmp.eq.s32.totalorder %s35, 0
      %p244 = por %p242, %p243
      %p245 = scmp.ne.s32.totalorder %s237, %s239
      %p246 = scmp.eq.s32.totalorder %s40, 1
      %p247 = por %p245, %p246
      %p248 = scmp.ne.s32.totalorder %s239, %s240
      %p249 = scmp.eq.s32.totalorder %s40, 0
      %p250 = por %p248, %p249
      %p251 = scmp.ne.s32.totalorder %s239, %s240
      %p252 = scmp.eq.s32.totalorder %s41, 1
      %p253 = por %p251, %p252
      %p255 = scmp.ne.s32.totalorder %s240, %s254
      %p256 = scmp.eq.s32.totalorder %s41, 0
      %p257 = por %p255, %p256
      %s259 = sadd.s32 %s258, 1
      %p262 = scmp.eq.s32.totalorder %s35, 1
      %p263 = scmp.ne.s32.totalorder %s258, %s260
      %p264 = scmp.eq.s32.totalorder %s35, 0
      %p265 = por %p263, %p264
      %p266 = scmp.ne.s32.totalorder %s258, %s260
      %p267 = scmp.eq.s32.totalorder %s40, 1
      %p268 = por %p266, %p267
      %p269 = scmp.ne.s32.totalorder %s260, %s261
      %p270 = scmp.eq.s32.totalorder %s40, 0
      %p271 = por %p269, %p270
      %p272 = scmp.ne.s32.totalorder %s260, %s261
      %p273 = scmp.eq.s32.totalorder %s41, 1
      %p274 = por %p272, %p273
      %p276 = scmp.ne.s32.totalorder %s261, %s275
      %p277 = scmp.eq.s32.totalorder %s41, 0
      %p278 = por %p276, %p277
      %s280 = sadd.s32 %s279, 1
      %p283 = scmp.eq.s32.totalorder %s35, 1
      %p284 = scmp.ne.s32.totalorder %s279, %s281
      %p285 = scmp.eq.s32.totalorder %s35, 0
      %p286 = por %p284, %p285
      %p287 = scmp.ne.s32.totalorder %s279, %s281
      %p288 = scmp.eq.s32.totalorder %s40, 1
      %p289 = por %p287, %p288
      %p290 = scmp.ne.s32.totalorder %s281, %s282
      %p291 = scmp.eq.s32.totalorder %s40, 0
      %p292 = por %p290, %p291
      %p293 = scmp.ne.s32.totalorder %s281, %s282
      %p294 = scmp.eq.s32.totalorder %s41, 1
      %p295 = por %p293, %p294
      %p297 = scmp.ne.s32.totalorder %s282, %s296
      %p298 = scmp.eq.s32.totalorder %s41, 0
      %p299 = por %p297, %p298
      %s301 = sadd.s32 %s300, 1
      %p304 = scmp.eq.s32.totalorder %s35, 1
      %p305 = scmp.ne.s32.totalorder %s300, %s302
      %p306 = scmp.eq.s32.totalorder %s35, 0
      %p307 = por %p305, %p306
      %p308 = scmp.ne.s32.totalorder %s300, %s302
      %p309 = scmp.eq.s32.totalorder %s40, 1
      %p310 = por %p308, %p309
      %p311 = scmp.ne.s32.totalorder %s302, %s303
      %p312 = scmp.eq.s32.totalorder %s40, 0
      %p313 = por %p311, %p312
      %p314 = scmp.ne.s32.totalorder %s302, %s303
      %p315 = scmp.eq.s32.totalorder %s41, 1
      %p316 = por %p314, %p315
      %p318 = scmp.ne.s32.totalorder %s303, %s317
      %p319 = scmp.eq.s32.totalorder %s41, 0
      %p320 = por %p318, %p319
      %s322 = sadd.s32 %s321, 1
      %p325 = scmp.eq.s32.totalorder %s35, 1
      %p326 = scmp.ne.s32.totalorder %s321, %s323
      %p327 = scmp.eq.s32.totalorder %s35, 0
      %p328 = por %p326, %p327
      %p329 = scmp.ne.s32.totalorder %s321, %s323
      %p330 = scmp.eq.s32.totalorder %s40, 1
      %p331 = por %p329, %p330
      %p332 = scmp.ne.s32.totalorder %s323, %s324
      %p333 = scmp.eq.s32.totalorder %s40, 0
      %p334 = por %p332, %p333
      %p335 = scmp.ne.s32.totalorder %s323, %s324
      %p336 = scmp.eq.s32.totalorder %s41, 1
      %p337 = por %p335, %p336
      %p339 = scmp.ne.s32.totalorder %s324, %s338
      %p340 = scmp.eq.s32.totalorder %s41, 0
      %p341 = por %p339, %p340
      %s343 = sadd.s32 %s342, 1
      %p346 = scmp.eq.s32.totalorder %s35, 1
      %p347 = scmp.ne.s32.totalorder %s342, %s344
      %p348 = scmp.eq.s32.totalorder %s35, 0
      %p349 = por %p347, %p348
      %p350 = scmp.ne.s32.totalorder %s342, %s344
      %p351 = scmp.eq.s32.totalorder %s40, 1
      %p352 = por %p350, %p351
      %p353 = scmp.ne.s32.totalorder %s344, %s345
      %p354 = scmp.eq.s32.totalorder %s40, 0
      %p355 = por %p353, %p354
      %p356 = scmp.ne.s32.totalorder %s344, %s345
      %p357 = scmp.eq.s32.totalorder %s41, 1
      %p358 = por %p356, %p357
      %p360 = scmp.ne.s32.totalorder %s345, %s359
      %p361 = scmp.eq.s32.totalorder %s41, 0
      %p362 = por %p360, %p361
      %s364 = sadd.s32 %s363, 1
      %p367 = scmp.eq.s32.totalorder %s35, 1
      %p368 = scmp.ne.s32.totalorder %s363, %s365
      %p369 = scmp.eq.s32.totalorder %s35, 0
      %p370 = por %p368, %p369
      %p371 = scmp.ne.s32.totalorder %s363, %s365
      %p372 = scmp.eq.s32.totalorder %s40, 1
      %p373 = por %p371, %p372
      %p374 = scmp.ne.s32.totalorder %s365, %s366
      %p375 = scmp.eq.s32.totalorder %s40, 0
      %p376 = por %p374, %p375
      %p377 = scmp.ne.s32.totalorder %s365, %s366
      %p378 = scmp.eq.s32.totalorder %s41, 1
      %p379 = por %p377, %p378
      %p381 = scmp.ne.s32.totalorder %s366, %s380
      %p382 = scmp.eq.s32.totalorder %s41, 0
      %p383 = por %p381, %p382
      %s385 = sadd.s32 %s384, 1
      %p388 = scmp.eq.s32.totalorder %s35, 1
      %p389 = scmp.ne.s32.totalorder %s384, %s386
      %p390 = scmp.eq.s32.totalorder %s35, 0
      %p391 = por %p389, %p390
      %p392 = scmp.ne.s32.totalorder %s384, %s386
      %p393 = scmp.eq.s32.totalorder %s40, 1
      %p394 = por %p392, %p393
      %p395 = scmp.ne.s32.totalorder %s386, %s387
      %p396 = scmp.eq.s32.totalorder %s40, 0
      %p397 = por %p395, %p396
      %p398 = scmp.ne.s32.totalorder %s386, %s387
      %p399 = scmp.eq.s32.totalorder %s41, 1
      %p400 = por %p398, %p399
      %p402 = scmp.ne.s32.totalorder %s387, %s401
      %p403 = scmp.eq.s32.totalorder %s41, 0
      %p404 = por %p402, %p403
      %s406 = sadd.s32 %s405, 1
      %p409 = scmp.eq.s32.totalorder %s35, 1
      %p410 = scmp.ne.s32.totalorder %s405, %s407
      %p411 = scmp.eq.s32.totalorder %s35, 0
      %p412 = por %p410, %p411
      %p413 = scmp.ne.s32.totalorder %s405, %s407
      %p414 = scmp.eq.s32.totalorder %s40, 1
      %p415 = por %p413, %p414
      %p416 = scmp.ne.s32.totalorder %s407, %s408
      %p417 = scmp.eq.s32.totalorder %s40, 0
      %p418 = por %p416, %p417
      %p419 = scmp.ne.s32.totalorder %s407, %s408
      %p420 = scmp.eq.s32.totalorder %s41, 1
      %p421 = por %p419, %p420
      %p423 = scmp.ne.s32.totalorder %s408, %s422
      %p424 = scmp.eq.s32.totalorder %s41, 0
      %p425 = por %p423, %p424
      %s427 = sadd.s32 %s426, 1
      %p430 = scmp.eq.s32.totalorder %s35, 1
      %p431 = scmp.ne.s32.totalorder %s426, %s428
      %p432 = scmp.eq.s32.totalorder %s35, 0
      %p433 = por %p431, %p432
      %p434 = scmp.ne.s32.totalorder %s426, %s428
      %p435 = scmp.eq.s32.totalorder %s40, 1
      %p436 = por %p434, %p435
      %p437 = scmp.ne.s32.totalorder %s428, %s429
      %p438 = scmp.eq.s32.totalorder %s40, 0
      %p439 = por %p437, %p438
      %p440 = scmp.ne.s32.totalorder %s428, %s429
      %p441 = scmp.eq.s32.totalorder %s41, 1
      %p442 = por %p440, %p441
      %p444 = scmp.ne.s32.totalorder %s429, %s443
      %p445 = scmp.eq.s32.totalorder %s41, 0
      %p446 = por %p444, %p445
      %s448 = sadd.s32 %s447, 1
      %p451 = scmp.eq.s32.totalorder %s35, 1
      %p452 = scmp.ne.s32.totalorder %s447, %s449
      %p453 = scmp.eq.s32.totalorder %s35, 0
      %p454 = por %p452, %p453
      %p455 = scmp.ne.s32.totalorder %s447, %s449
      %p456 = scmp.eq.s32.totalorder %s40, 1
      %p457 = por %p455, %p456
      %p458 = scmp.ne.s32.totalorder %s449, %s450
      %p459 = scmp.eq.s32.totalorder %s40, 0
      %p460 = por %p458, %p459
      %p461 = scmp.ne.s32.totalorder %s449, %s450
      %p462 = scmp.eq.s32.totalorder %s41, 1
      %p463 = por %p461, %p462
      %p465 = scmp.ne.s32.totalorder %s450, %s464
      %p466 = scmp.eq.s32.totalorder %s41, 0
      %p467 = por %p465, %p466
      %s469 = sadd.s32 %s468, 1
      %p472 = scmp.eq.s32.totalorder %s35, 1
      %p473 = scmp.ne.s32.totalorder %s468, %s470
      %p474 = scmp.eq.s32.totalorder %s35, 0
      %p475 = por %p473, %p474
      %p476 = scmp.ne.s32.totalorder %s468, %s470
      %p477 = scmp.eq.s32.totalorder %s40, 1
      %p478 = por %p476, %p477
      %p479 = scmp.ne.s32.totalorder %s470, %s471
      %p480 = scmp.eq.s32.totalorder %s40, 0
      %p481 = por %p479, %p480
      %p482 = scmp.ne.s32.totalorder %s470, %s471
      %p483 = scmp.eq.s32.totalorder %s41, 1
      %p484 = por %p482, %p483
      %p486 = scmp.ne.s32.totalorder %s471, %s485
      %p487 = scmp.eq.s32.totalorder %s41, 0
      %p488 = por %p486, %p487
      %s489 = ssub.s32 %s35, %s42
      %p490 = scmp.eq.s32.totalorder %s489, 0
      %s492 = sadd.s32 %s491, 1
      %s493 = scalar_select %p490, %s491, %s492
      %p496 = pneg %p490
      %p497 = scmp.eq.s32.totalorder %s35, 1
      %p498 = por %p496, %p497
      %p499 = scmp.ne.s32.totalorder %s491, %s494
      %p500 = scmp.eq.s32.totalorder %s35, 0
      %p501 = por %p499, %p500
      %p502 = scmp.ne.s32.totalorder %s491, %s494
      %p503 = scmp.eq.s32.totalorder %s40, 1
      %p504 = por %p502, %p503
      %p505 = scmp.ne.s32.totalorder %s494, %s495
      %p506 = scmp.eq.s32.totalorder %s40, 0
      %p507 = por %p505, %p506
      %p508 = scmp.ne.s32.totalorder %s494, %s495
      %p509 = scmp.eq.s32.totalorder %s41, 1
      %p510 = por %p508, %p509
      %p512 = scmp.ne.s32.totalorder %s495, %s511
      %p513 = scmp.eq.s32.totalorder %s41, 0
      %p514 = por %p512, %p513
      %p515 = scmp.le.s32.totalorder 1, %s35
      %p516 = scmp.lt.s32.totalorder %s35, 3
      %p517 = pnand %p515, %p516
      %p518 = pneg %p517
      // Predicated region
      $region9: #{tpu_custom_call.1} parent=5 // pred_check
        _
      $region10: #{tpu_custom_call.1} parent=5 // pred_check_branch
        %520 = sbr.rel (%p517) target = $region12
      $region11: #{tpu_custom_call.1} parent=5 // pred_region
        %s521 = ssub.s32 %s35, 1
        // Predicated region
        $region13: #{tpu_custom_call.1} parent=11 // pred_check
          %p522 = pneg %p82
        $region14: #{tpu_custom_call.1} parent=11 // pred_check_branch
          %524 = sbr.rel (%p522) target = $region16
        $region15: #{tpu_custom_call.1} parent=11 // pred_region
          %s526 = ssub.s32 16, 16
          %527 = vsyncadd [#allocation3], %s526
          %s529 = sshll.u32 [#allocation2], 4
          %s530 = int_to_ptr.vmem [resolvable:$true] %s529
          %532 = dma.hbm_to_vmem [thread:$0]  %s1, 16, %s530, [#allocation3]
        $region16: #{tpu_custom_call.1} parent=11 // pred_fallthru
          _
        // Predicated region
        $region17: #{tpu_custom_call.1} parent=11 // pred_check
          %p533 = pneg %p103
        $region18: #{tpu_custom_call.1} parent=11 // pred_check_branch
          %535 = sbr.rel (%p533) target = $region20
        $region19: #{tpu_custom_call.1} parent=11 // pred_region
          %s537 = ssub.s32 16, 16
          %538 = vsyncadd [#allocation6], %s537
          %s540 = sshll.u32 [#allocation5], 4
          %s541 = int_to_ptr.vmem [resolvable:$true] %s540
          %543 = dma.hbm_to_vmem [thread:$0]  %s2, 16, %s541, [#allocation6]
        $region20: #{tpu_custom_call.1} parent=11 // pred_fallthru
          _
        // Predicated region
        $region21: #{tpu_custom_call.1} parent=11 // pred_check
          %p544 = pneg %p124
        $region22: #{tpu_custom_call.1} parent=11 // pred_check_branch
          %546 = sbr.rel (%p544) target = $region24
        $region23: #{tpu_custom_call.1} parent=11 // pred_region
          _
        $region24: #{tpu_custom_call.1} parent=11 // pred_fallthru
          _
        // Predicated region
        $region25: #{tpu_custom_call.1} parent=11 // pred_check
          %p547 = pneg %p145
        $region26: #{tpu_custom_call.1} parent=11 // pred_check_branch
          %549 = sbr.rel (%p547) target = $region28
        $region27: #{tpu_custom_call.1} parent=11 // pred_region
          _
        $region28: #{tpu_custom_call.1} parent=11 // pred_fallthru
          _
        // Predicated region
        $region29: #{tpu_custom_call.1} parent=11 // pred_check
          %p550 = pneg %p166
        $region30: #{tpu_custom_call.1} parent=11 // pred_check_branch
          %552 = sbr.rel (%p550) target = $region32
        $region31: #{tpu_custom_call.1} parent=11 // pred_region
          %s554 = ssub.s32 16, 16
          %555 = vsyncadd [#allocation6], %s554
          %s557 = sshll.u32 [#allocation7], 4
          %s558 = int_to_ptr.vmem [resolvable:$true] %s557
          %560 = dma.hbm_to_vmem [thread:$0]  %s5, 16, %s558, [#allocation6]
        $region32: #{tpu_custom_call.1} parent=11 // pred_fallthru
          _
        // Predicated region
        $region33: #{tpu_custom_call.1} parent=11 // pred_check
          %p561 = pneg %p187
        $region34: #{tpu_custom_call.1} parent=11 // pred_check_branch
          %563 = sbr.rel (%p561) target = $region36
        $region35: #{tpu_custom_call.1} parent=11 // pred_region
          %s565 = ssub.s32 16, 16
          %566 = vsyncadd [#allocation9], %s565
          %s568 = sshll.u32 [#allocation8], 4
          %s569 = int_to_ptr.vmem [resolvable:$true] %s568
          %571 = dma.hbm_to_vmem [thread:$0]  %s6, 16, %s569, [#allocation9]
        $region36: #{tpu_custom_call.1} parent=11 // pred_fallthru
          _
        // Predicated region
        $region37: #{tpu_custom_call.1} parent=11 // pred_check
          %p572 = pneg %p208
        $region38: #{tpu_custom_call.1} parent=11 // pred_check_branch
          %574 = sbr.rel (%p572) target = $region40
        $region39: #{tpu_custom_call.1} parent=11 // pred_region
          _
        $region40: #{tpu_custom_call.1} parent=11 // pred_fallthru
          _
        // Predicated region
        $region41: #{tpu_custom_call.1} parent=11 // pred_check
          %p575 = pneg %p229
        $region42: #{tpu_custom_call.1} parent=11 // pred_check_branch
          %577 = sbr.rel (%p575) target = $region44
        $region43: #{tpu_custom_call.1} parent=11 // pred_region
          _
        $region44: #{tpu_custom_call.1} parent=11 // pred_fallthru
          _
        // Predicated region
        $region45: #{tpu_custom_call.1} parent=11 // pred_check
          %p578 = pneg %p250
        $region46: #{tpu_custom_call.1} parent=11 // pred_check_branch
          %580 = sbr.rel (%p578) target = $region48
        $region47: #{tpu_custom_call.1} parent=11 // pred_region
          %s582 = ssub.s32 16, 16
          %583 = vsyncadd [#allocation9], %s582
          %s585 = sshll.u32 [#allocation10], 4
          %s586 = int_to_ptr.vmem [resolvable:$true] %s585
          %588 = dma.hbm_to_vmem [thread:$0]  %s9, 16, %s586, [#allocation9]
        $region48: #{tpu_custom_call.1} parent=11 // pred_fallthru
          _
        // Predicated region
        $region49: #{tpu_custom_call.1} parent=11 // pred_check
          %p589 = pneg %p271
        $region50: #{tpu_custom_call.1} parent=11 // pred_check_branch
          %591 = sbr.rel (%p589) target = $region52
        $region51: #{tpu_custom_call.1} parent=11 // pred_region
          %s593 = ssub.s32 16, 16
          %594 = vsyncadd [#allocation12], %s593
          %s596 = sshll.u32 [#allocation11], 4
          %s597 = int_to_ptr.vmem [resolvable:$true] %s596
          %599 = dma.hbm_to_vmem [thread:$0]  %s10, 16, %s597, [#allocation12]
        $region52: #{tpu_custom_call.1} parent=11 // pred_fallthru
          _
        // Predicated region
        $region53: #{tpu_custom_call.1} parent=11 // pred_check
          %p600 = pneg %p292
        $region54: #{tpu_custom_call.1} parent=11 // pred_check_branch
          %602 = sbr.rel (%p600) target = $region56
        $region55: #{tpu_custom_call.1} parent=11 // pred_region
          _
        $region56: #{tpu_custom_call.1} parent=11 // pred_fallthru
          _
        // Predicated region
        $region57: #{tpu_custom_call.1} parent=11 // pred_check
          %p603 = pneg %p313
        $region58: #{tpu_custom_call.1} parent=11 // pred_check_branch
          %605 = sbr.rel (%p603) target = $region60
        $region59: #{tpu_custom_call.1} parent=11 // pred_region
          _
        $region60: #{tpu_custom_call.1} parent=11 // pred_fallthru
          _
        // Predicated region
        $region61: #{tpu_custom_call.1} parent=11 // pred_check
          %p606 = pneg %p334
        $region62: #{tpu_custom_call.1} parent=11 // pred_check_branch
          %608 = sbr.rel (%p606) target = $region64
        $region63: #{tpu_custom_call.1} parent=11 // pred_region
          %s610 = ssub.s32 16, 16
          %611 = vsyncadd [#allocation12], %s610
          %s613 = sshll.u32 [#allocation13], 4
          %s614 = int_to_ptr.vmem [resolvable:$true] %s613
          %616 = dma.hbm_to_vmem [thread:$0]  %s13, 16, %s614, [#allocation12]
        $region64: #{tpu_custom_call.1} parent=11 // pred_fallthru
          _
        // Predicated region
        $region65: #{tpu_custom_call.1} parent=11 // pred_check
          %p617 = pneg %p355
        $region66: #{tpu_custom_call.1} parent=11 // pred_check_branch
          %619 = sbr.rel (%p617) target = $region68
        $region67: #{tpu_custom_call.1} parent=11 // pred_region
          %s621 = ssub.s32 16, 16
          %622 = vsyncadd [#allocation15], %s621
          %s624 = sshll.u32 [#allocation14], 4
          %s625 = int_to_ptr.vmem [resolvable:$true] %s624
          %627 = dma.hbm_to_vmem [thread:$0]  %s14, 16, %s625, [#allocation15]
        $region68: #{tpu_custom_call.1} parent=11 // pred_fallthru
          _
        // Predicated region
        $region69: #{tpu_custom_call.1} parent=11 // pred_check
          %p628 = pneg %p376
        $region70: #{tpu_custom_call.1} parent=11 // pred_check_branch
          %630 = sbr.rel (%p628) target = $region72
        $region71: #{tpu_custom_call.1} parent=11 // pred_region
          %s632 = ssub.s32 512, 512
          %633 = vsyncadd [#allocation15], %s632
          %s634 = sshll.u32 [#allocation16], 4
          %s635 = int_to_ptr.vmem [resolvable:$true] %s634
          %640 = dma.hbm_to_vmem [thread:$0]  %s15, 512, %s635, [#allocation15], 128, 128, 8
        $region72: #{tpu_custom_call.1} parent=11 // pred_fallthru
          _
        // Predicated region
        $region73: #{tpu_custom_call.1} parent=11 // pred_check
          %p641 = pneg %p397
        $region74: #{tpu_custom_call.1} parent=11 // pred_check_branch
          %643 = sbr.rel (%p641) target = $region76
        $region75: #{tpu_custom_call.1} parent=11 // pred_region
          _
        $region76: #{tpu_custom_call.1} parent=11 // pred_fallthru
          _
        // Predicated region
        $region77: #{tpu_custom_call.1} parent=11 // pred_check
          %p644 = pneg %p418
        $region78: #{tpu_custom_call.1} parent=11 // pred_check_branch
          %646 = sbr.rel (%p644) target = $region80
        $region79: #{tpu_custom_call.1} parent=11 // pred_region
          _
        $region80: #{tpu_custom_call.1} parent=11 // pred_fallthru
          _
        // Predicated region
        $region81: #{tpu_custom_call.1} parent=11 // pred_check
          %p647 = pneg %p439
        $region82: #{tpu_custom_call.1} parent=11 // pred_check_branch
          %649 = sbr.rel (%p647) target = $region84
        $region83: #{tpu_custom_call.1} parent=11 // pred_region
          _
        $region84: #{tpu_custom_call.1} parent=11 // pred_fallthru
          _
        // Predicated region
        $region85: #{tpu_custom_call.1} parent=11 // pred_check
          %p650 = pneg %p460
        $region86: #{tpu_custom_call.1} parent=11 // pred_check_branch
          %652 = sbr.rel (%p650) target = $region88
        $region87: #{tpu_custom_call.1} parent=11 // pred_region
          _
        $region88: #{tpu_custom_call.1} parent=11 // pred_fallthru
          _
        // Predicated region
        $region89: #{tpu_custom_call.1} parent=11 // pred_check
          %p653 = pneg %p481
        $region90: #{tpu_custom_call.1} parent=11 // pred_check_branch
          %655 = sbr.rel (%p653) target = $region92
        $region91: #{tpu_custom_call.1} parent=11 // pred_region
          _
        $region92: #{tpu_custom_call.1} parent=11 // pred_fallthru
          _
      $region12: #{tpu_custom_call.1} parent=5 // pred_fallthru
        _
      %p656 = scmp.lt.s32.totalorder %s35, 2
      // Predicated region
      $region93: #{tpu_custom_call.1} parent=5 // pred_check
        %p657 = pneg %p656
      $region94: #{tpu_custom_call.1} parent=5 // pred_check_branch
        %659 = sbr.rel (%p657) target = $region96
      $region95: #{tpu_custom_call.1} parent=5 // pred_region
        // Predicated region
        $region97: #{tpu_custom_call.1} parent=95 // pred_check
          %p660 = pneg %p55
        $region98: #{tpu_custom_call.1} parent=95 // pred_check_branch
          %662 = sbr.rel (%p660) target = $region100
        $region99: #{tpu_custom_call.1} parent=95 // pred_region
          %p663 = scmp.lt.s32.totalorder %s35, 1
          %s664 = scalar_select %p663, %s35, 1
          %s665 = smul.addr %s664, 4
          %s666 = smul.addr %s665, 8
          %s667 = scalar_lea.vmem %s0, %s666
        $region100: #{tpu_custom_call.1} parent=95 // pred_fallthru
          _
      $region96: #{tpu_custom_call.1} parent=5 // pred_fallthru
        _
      %p668 = scmp.le.s32.totalorder 1, %s35
      %p669 = scmp.lt.s32.totalorder %s35, 3
      %p670 = pnand %p668, %p669
      %p671 = pneg %p670
      // Predicated region
      $region101: #{tpu_custom_call.1} parent=5 // pred_check
        _
      $region102: #{tpu_custom_call.1} parent=5 // pred_check_branch
        %673 = sbr.rel (%p670) target = $region104
      $region103: #{tpu_custom_call.1} parent=5 // pred_region
        %s674 = ssub.s32 %s35, 1
        // Predicated region
        $region105: #{tpu_custom_call.1} parent=103 // pred_check
          %p675 = pneg %p82
        $region106: #{tpu_custom_call.1} parent=103 // pred_check_branch
          %677 = sbr.rel (%p675) target = $region108
        $region107: #{tpu_custom_call.1} parent=103 // pred_region
          %678 = dma.done [#allocation3], 16
        $region108: #{tpu_custom_call.1} parent=103 // pred_fallthru
          _
        // Predicated region
        $region109: #{tpu_custom_call.1} parent=103 // pred_check
          %p679 = pneg %p103
        $region110: #{tpu_custom_call.1} parent=103 // pred_check_branch
          %681 = sbr.rel (%p679) target = $region112
        $region111: #{tpu_custom_call.1} parent=103 // pred_region
          %682 = dma.done [#allocation6], 16
        $region112: #{tpu_custom_call.1} parent=103 // pred_fallthru
          _
        // Predicated region
        $region113: #{tpu_custom_call.1} parent=103 // pred_check
          %p683 = pneg %p166
        $region114: #{tpu_custom_call.1} parent=103 // pred_check_branch
          %685 = sbr.rel (%p683) target = $region116
        $region115: #{tpu_custom_call.1} parent=103 // pred_region
          %686 = dma.done [#allocation6], 16
        $region116: #{tpu_custom_call.1} parent=103 // pred_fallthru
          _
        // Predicated region
        $region117: #{tpu_custom_call.1} parent=103 // pred_check
          %p687 = pneg %p187
        $region118: #{tpu_custom_call.1} parent=103 // pred_check_branch
          %689 = sbr.rel (%p687) target = $region120
        $region119: #{tpu_custom_call.1} parent=103 // pred_region
          %690 = dma.done [#allocation9], 16
        $region120: #{tpu_custom_call.1} parent=103 // pred_fallthru
          _
        // Predicated region
        $region121: #{tpu_custom_call.1} parent=103 // pred_check
          %p691 = pneg %p250
        $region122: #{tpu_custom_call.1} parent=103 // pred_check_branch
          %693 = sbr.rel (%p691) target = $region124
        $region123: #{tpu_custom_call.1} parent=103 // pred_region
          %694 = dma.done [#allocation9], 16
        $region124: #{tpu_custom_call.1} parent=103 // pred_fallthru
          _
        // Predicated region
        $region125: #{tpu_custom_call.1} parent=103 // pred_check
          %p695 = pneg %p271
        $region126: #{tpu_custom_call.1} parent=103 // pred_check_branch
          %697 = sbr.rel (%p695) target = $region128
        $region127: #{tpu_custom_call.1} parent=103 // pred_region
          %698 = dma.done [#allocation12], 16
        $region128: #{tpu_custom_call.1} parent=103 // pred_fallthru
          _
        // Predicated region
        $region129: #{tpu_custom_call.1} parent=103 // pred_check
          %p699 = pneg %p334
        $region130: #{tpu_custom_call.1} parent=103 // pred_check_branch
          %701 = sbr.rel (%p699) target = $region132
        $region131: #{tpu_custom_call.1} parent=103 // pred_region
          %702 = dma.done [#allocation12], 16
        $region132: #{tpu_custom_call.1} parent=103 // pred_fallthru
          _
        // Predicated region
        $region133: #{tpu_custom_call.1} parent=103 // pred_check
          %p703 = pneg %p355
        $region134: #{tpu_custom_call.1} parent=103 // pred_check_branch
          %705 = sbr.rel (%p703) target = $region136
        $region135: #{tpu_custom_call.1} parent=103 // pred_region
          %706 = dma.done [#allocation15], 16
        $region136: #{tpu_custom_call.1} parent=103 // pred_fallthru
          _
        // Predicated region
        $region137: #{tpu_custom_call.1} parent=103 // pred_check
          %p707 = pneg %p376
        $region138: #{tpu_custom_call.1} parent=103 // pred_check_branch
          %709 = sbr.rel (%p707) target = $region140
        $region139: #{tpu_custom_call.1} parent=103 // pred_region
          %710 = dma.done [#allocation15], 512
        $region140: #{tpu_custom_call.1} parent=103 // pred_fallthru
          _
        %p711 = scmp.lt.s32.totalorder %s40, 1
        %s712 = scalar_select %p711, %s40, 1
        %s713 = smul.addr %s712, 4
        %s714 = smul.addr %s713, 8
        %s715 = scalar_lea.vmem %s0, %s714
        %p716 = pneg %p61
        %p717 = pneg %p58
        %p718 = pneg %p82
        %p719 = pneg %p79
        %p720 = pneg %p103
        %p721 = pneg %p100
        %p722 = pneg %p124
        %p723 = pneg %p121
        %p724 = pneg %p145
        %p725 = pneg %p142
        %p726 = pneg %p166
        %p727 = pneg %p163
        %p728 = pneg %p187
        %p729 = pneg %p184
        %p730 = pneg %p208
        %p731 = pneg %p205
        %p732 = pneg %p229
        %p733 = pneg %p226
        %p734 = pneg %p250
        %p735 = pneg %p247
        %p736 = pneg %p271
        %p737 = pneg %p268
        %p738 = pneg %p292
        %p739 = pneg %p289
        %p740 = pneg %p313
        %p741 = pneg %p310
        %p742 = pneg %p334
        %p743 = pneg %p331
        %p744 = pneg %p355
        %p745 = pneg %p352
        %p746 = pneg %p376
        %p747 = pneg %p373
        %p748 = pneg %p397
        %p749 = pneg %p394
        %p750 = pneg %p418
        %p751 = pneg %p415
        %p752 = pneg %p439
        %p753 = pneg %p436
        %p754 = pneg %p460
        %p755 = pneg %p457
        %p756 = pneg %p481
        %p757 = pneg %p478
        %p758 = pneg %p507
        %p759 = pneg %p504
        %s760 = sand.u32 %s494, 1
        %s761 = scalar_lea.sflag [#allocation4], %s760
        %s762 = sand.u32 %s494, 1
        %s763 = smul.addr %s762, 8
        %s764 = scalar_lea.vmem [#allocation17], %s763
        %p765 = scmp.lt.s32.totalorder %s40, 1
        %s766 = scalar_select %p765, %s40, 1
        %s767 = smul.addr %s766, 4
        %s768 = smul.addr %s767, 8
        %s769 = scalar_lea.vmem %s0, %s768
        %v770 = vld [vmem:[%s769] sm:$0xff]
        %v771 = vld [vmem:[%s769 + $0x8] sm:$0xff]
        %v772 = vld [vmem:[%s769 + $0x10] sm:$0xff]
        %v773 = vld [vmem:[%s769 + $0x18] sm:$0xff]
        %v774 = vld [vmem:[#allocation2] sm:$0x1]
        %v775 = vld [vmem:[#allocation5] sm:$0x1]
        %v776 = vld [vmem:[%s3] sm:$0xff]
        %v777 = vld [vmem:[%s3 + $0x8] sm:$0xff]
        %v778 = vld [vmem:[%s3 + $0x10] sm:$0xff]
        %v779 = vld [vmem:[%s3 + $0x18] sm:$0xff]
        %v780 = vld [vmem:[%s4] sm:$0xff]
        %v781 = vld [vmem:[%s4 + $0x8] sm:$0xff]
        %v782 = vld [vmem:[%s4 + $0x10] sm:$0xff]
        %v783 = vld [vmem:[%s4 + $0x18] sm:$0xff]
        %vm784 = vcmask 261120
        %v785 = vsel %vm784, %v770, 0.0
        %786 = vadd.xlane.f32.xlu0 %v785
        %v787 = vpop.xlane.xlu0 %786
        %v788 = vsel %vm784, %v771, 0.0
        %789 = vadd.xlane.f32.xlu0 %v788
        %v790 = vpop.xlane.xlu0 %789
        %v791 = vsel %vm784, %v772, 0.0
        %792 = vadd.xlane.f32.xlu0 %v791
        %v793 = vpop.xlane.xlu0 %792
        %v794 = vsel %vm784, %v773, 0.0
        %795 = vadd.xlane.f32.xlu0 %v794
        %v796 = vpop.xlane.xlu0 %795
        %v797 = vrcp.pop 32.0
        %v798 = vmul.f32 %v787, %v797
        %v799 = vmul.f32 %v790, %v797
        %v800 = vmul.f32 %v793, %v797
        %v801 = vmul.f32 %v796, %v797
        %v802 = vsub.f32 %v770, %v798
        %v803 = vsub.f32 %v771, %v799
        %v804 = vsub.f32 %v772, %v800
        %v805 = vsub.f32 %v773, %v801
        %v806 = vmul.f32 %v802, %v802
        %v807 = vmul.f32 %v803, %v803
        %v808 = vmul.f32 %v804, %v804
        %v809 = vmul.f32 %v805, %v805
        %v810 = vsel %vm784, %v806, 0.0
        %811 = vadd.xlane.f32.xlu0 %v810
        %v812 = vpop.xlane.xlu0 %811
        %v813 = vsel %vm784, %v807, 0.0
        %814 = vadd.xlane.f32.xlu0 %v813
        %v815 = vpop.xlane.xlu0 %814
        %v816 = vsel %vm784, %v808, 0.0
        %817 = vadd.xlane.f32.xlu0 %v816
        %v818 = vpop.xlane.xlu0 %817
        %v819 = vsel %vm784, %v809, 0.0
        %820 = vadd.xlane.f32.xlu0 %v819
        %v821 = vpop.xlane.xlu0 %820
        %v822 = vmul.f32 %v812, %v797
        %v823 = vmul.f32 %v815, %v797
        %v824 = vmul.f32 %v818, %v797
        %v825 = vmul.f32 %v821, %v797
        %v826 = vadd.f32 %v822, 1e-05
        %v827 = vadd.f32 %v823, 1e-05
        %v828 = vadd.f32 %v824, 1e-05
        %v829 = vadd.f32 %v825, 1e-05
        %v830 = vrsqrt.pop %v826
        %v831 = vrsqrt.pop %v827
        %v832 = vrsqrt.pop %v828
        %v833 = vrsqrt.pop %v829
        %v834 = vmul.f32 %v802, %v830
        %v835 = vmul.f32 %v803, %v831
        %v836 = vmul.f32 %v804, %v832
        %v837 = vmul.f32 %v805, %v833
        %v839 = vlaneseq
        %v840 = vshrl.u32 %v839, 7
        %v841 = vsub.s32 0, %v840
        %v842 = vrot.slane %v774, %v841
        %v844 = vmul.f32 %v834, %v842
        %v845 = vmul.f32 %v835, %v842
        %v846 = vmul.f32 %v836, %v842
        %v847 = vmul.f32 %v837, %v842
        %v849 = vlaneseq
        %v850 = vshrl.u32 %v849, 7
        %v851 = vsub.s32 0, %v850
        %v852 = vrot.slane %v775, %v851
        %v854 = vadd.f32 %v844, %v852
        %v855 = vadd.f32 %v845, %v852
        %v856 = vadd.f32 %v846, %v852
        %v857 = vadd.f32 %v847, %v852
        %862 = vrot.lane.b32.xlu0 %v854, 1
        %v863 = vpop.permute.xlu0 %862
        %864 = vrot.lane.b32.xlu0 %v855, 1
        %v865 = vpop.permute.xlu0 %864
        %866 = vrot.lane.b32.xlu0 %v856, 1
        %v867 = vpop.permute.xlu0 %866
        %868 = vrot.lane.b32.xlu0 %v857, 1
        %v869 = vpop.permute.xlu0 %868
        %vm874 = vcmask 7168
        %v875 = vsel %vm874, 0.0, %v863
        %v876 = vsel %vm874, 0.0, %v865
        %v877 = vsel %vm874, 0.0, %v867
        %v878 = vsel %vm874, 0.0, %v869
        %vm879 = vcmask 269312
        %v880 = vsel %vm879, %v875, 0.0
        %v881 = vsel %vm879, %v876, 0.0
        %v882 = vsel %vm879, %v877, 0.0
        %v883 = vsel %vm879, %v878, 0.0
        %888 = vrot.lane.b32.xlu0 %v880, 127
        %v889 = vpop.permute.xlu0 %888
        %890 = vrot.lane.b32.xlu0 %v881, 127
        %v891 = vpop.permute.xlu0 %890
        %892 = vrot.lane.b32.xlu0 %v882, 127
        %v893 = vpop.permute.xlu0 %892
        %894 = vrot.lane.b32.xlu0 %v883, 127
        %v895 = vpop.permute.xlu0 %894
        %900 = vrot.lane.b32.xlu0 %v880, 126
        %v901 = vpop.permute.xlu0 %900
        %902 = vrot.lane.b32.xlu0 %v881, 126
        %v903 = vpop.permute.xlu0 %902
        %904 = vrot.lane.b32.xlu0 %v882, 126
        %v905 = vpop.permute.xlu0 %904
        %906 = vrot.lane.b32.xlu0 %v883, 126
        %v907 = vpop.permute.xlu0 %906
        %913 = vset.pattern.permute.xlu0 0
        %914 = vperm.xlu0 %913, %v780
        %v915 = vpop.permute.xlu0 %914
        %918 = vset.pattern.permute.xlu0 0
        %919 = vperm.xlu0 %918, %v781
        %v920 = vpop.permute.xlu0 %919
        %923 = vset.pattern.permute.xlu0 0
        %924 = vperm.xlu0 %923, %v782
        %v925 = vpop.permute.xlu0 %924
        %928 = vset.pattern.permute.xlu0 0
        %929 = vperm.xlu0 %928, %v783
        %v930 = vpop.permute.xlu0 %929
        %vm932 = vcmask 785408
        %v934 = vsel %vm932, %v776, 0
        %v937 = vsel %vm932, %v777, 0
        %v940 = vsel %vm932, %v778, 0
        %v943 = vsel %vm932, %v779, 0
        %945 = vmatprep.subr.mxu0 0.0
        %946 = vmatpush1.msra.mxu0 0.0
        %947 = vmatprep.subr.mxu0 0.0
        %948 = vmatpush1.msra.mxu0 0.0
        %949 = vmatprep.subr.mxu0 0.0
        %950 = vmatpush1.msra.mxu0 0.0
        %951 = vmatprep.subr.mxu0 0.0
        %952 = vmatpush1.msra.mxu0 0.0
        %953 = vmatprep.subr.mxu0 0.0
        %954 = vmatpush1.msra.mxu0 %v907
        %955 = vmatprep.subr.mxu0 0.0
        %956 = vmatpush1.msra.mxu0 %v905
        %957 = vmatprep.subr.mxu0 0.0
        %958 = vmatpush1.msra.mxu0 %v903
        %959 = vmatprep.subr.mxu0 0.0
        %960 = vmatpush1.msra.mxu0 %v901
        %961 = vmatprep.subr.mxu0 0.0
        %962 = vmatpush1.msra.mxu0 %v895
        %963 = vmatprep.subr.mxu0 0.0
        %964 = vmatpush1.msra.mxu0 %v893
        %965 = vmatprep.subr.mxu0 0.0
        %966 = vmatpush1.msra.mxu0 %v891
        %967 = vmatprep.subr.mxu0 0.0
        %968 = vmatpush1.msra.mxu0 %v889
        %969 = vmatprep.subr.mxu0 0.0
        %970 = vmatpush1.msra.mxu0 %v883
        %971 = vmatprep.subr.mxu0 0.0
        %972 = vmatpush1.msra.mxu0 %v882
        %973 = vmatprep.subr.mxu0 0.0
        %974 = vmatpush1.msra.mxu0 %v881
        %975 = vmatprep.subr.mxu0 0.0
        %976 = vmatpush1.msra.mxu0 %v880
        %977 = vmatprep.subr.mxu0 0.0
        %978 = vmatpush2.msra.mxu0 0.0
        %979 = vmatprep.subr.mxu0 0.0
        %980 = vmatpush2.msra.mxu0 0.0
        %981 = vmatprep.subr.mxu0 0.0
        %982 = vmatpush2.msra.mxu0 0.0
        %983 = vmatprep.subr.mxu0 0.0
        %984 = vmatpush2.msra.mxu0 0.0
        %985 = vmatprep.subr.mxu0 0.0
        %986 = vmatpush2.msra.mxu0 0.0
        %987 = vmatprep.subr.mxu0 0.0
        %988 = vmatpush2.msra.mxu0 0.0
        %989 = vmatprep.subr.mxu0 0.0
        %990 = vmatpush2.msra.mxu0 0.0
        %991 = vmatprep.subr.mxu0 0.0
        %992 = vmatpush2.msra.mxu0 0.0
        %993 = vmatprep.subr.mxu0 0.0
        %994 = vmatpush2.msra.mxu0 0.0
        %995 = vmatprep.subr.mxu0 0.0
        %996 = vmatpush2.msra.mxu0 0.0
        %997 = vmatprep.subr.mxu0 0.0
        %998 = vmatpush2.msra.mxu0 0.0
        %999 = vmatprep.subr.mxu0 0.0
        %1000 = vmatpush2.msra.mxu0 0.0
        %1001 = vmatprep.subr.mxu0 0.0
        %1002 = vmatpush2.msra.mxu0 0.0
        %1003 = vmatprep.subr.mxu0 0.0
        %1004 = vmatpush2.msra.mxu0 0.0
        %1005 = vmatprep.subr.mxu0 0.0
        %1006 = vmatpush2.msra.mxu0 0.0
        %1007 = vmatprep.subr.mxu0 0.0
        %1008 = vmatpush2.msra.mxu0 0.0
        %1009 = vmatprep.mubr.f32.mxu0 0.0
        %1010 = vmatmul.mubr.f32.gmra.mxu0 %v934
        %v1011 = vpop.f32.mrf.mxu0
        %v1012 = vadd.f32 %v915, %v1011
        %v1013 = vpop.f32.mrf.mxu0
        %1014 = vmatprep.mubr.f32.mxu0 0.0
        %1015 = vmatmul.mubr.f32.gmra.mxu0 %v937
        %v1016 = vpop.f32.mrf.mxu0
        %v1017 = vadd.f32 %v920, %v1016
        %v1018 = vpop.f32.mrf.mxu0
        %1019 = vmatprep.mubr.f32.mxu0 0.0
        %1020 = vmatmul.mubr.f32.gmra.mxu0 %v940
        %v1021 = vpop.f32.mrf.mxu0
        %v1022 = vadd.f32 %v925, %v1021
        %v1023 = vpop.f32.mrf.mxu0
        %1024 = vmatprep.mubr.f32.mxu0 0.0
        %1025 = vmatmul.mubr.f32.gmra.mxu0 %v943
        %v1026 = vpop.f32.mrf.mxu0
        %v1027 = vadd.f32 %v930, %v1026
        %v1028 = vpop.f32.mrf.mxu0
        %1029 = vdwg.mxu0
        %v1030 = vmul.f32 %v1012, 0.5
        %v1031 = vmul.f32 %v1017, 0.5
        %v1032 = vmul.f32 %v1022, 0.5
        %v1033 = vmul.f32 %v1027, 0.5
        %v1034 = vmul.f32 %v1012, 0.70710677
        %v1035 = vmul.f32 %v1017, 0.70710677
        %v1036 = vmul.f32 %v1022, 0.70710677
        %v1037 = vmul.f32 %v1027, 0.70710677
        %v1038 = verf.f32.pop %v1034
        %v1039 = verf.f32.pop %v1035
        %v1040 = verf.f32.pop %v1036
        %v1041 = verf.f32.pop %v1037
        %v1042 = vadd.f32 %v1038, 1.0
        %v1043 = vadd.f32 %v1039, 1.0
        %v1044 = vadd.f32 %v1040, 1.0
        %v1045 = vadd.f32 %v1041, 1.0
        %v1046 = vmul.f32 %v1030, %v1042
        %v1047 = vmul.f32 %v1031, %v1043
        %v1048 = vmul.f32 %v1032, %v1044
        %v1049 = vmul.f32 %v1033, %v1045
        %v1050 = vld [vmem:[#allocation7] sm:$0x1]
        %v1051 = vld [vmem:[#allocation8] sm:$0x1]
        %v1052 = vld [vmem:[%s7] sm:$0xff]
        %v1053 = vld [vmem:[%s7 + $0x8] sm:$0xff]
        %v1054 = vld [vmem:[%s7 + $0x10] sm:$0xff]
        %v1055 = vld [vmem:[%s7 + $0x18] sm:$0xff]
        %v1056 = vld [vmem:[%s8] sm:$0xff]
        %v1057 = vld [vmem:[%s8 + $0x8] sm:$0xff]
        %v1058 = vld [vmem:[%s8 + $0x10] sm:$0xff]
        %v1059 = vld [vmem:[%s8 + $0x18] sm:$0xff]
        %v1060 = vsel %vm784, %v1046, 0.0
        %1061 = vadd.xlane.f32.xlu0 %v1060
        %v1062 = vpop.xlane.xlu0 %1061
        %v1063 = vsel %vm784, %v1047, 0.0
        %1064 = vadd.xlane.f32.xlu0 %v1063
        %v1065 = vpop.xlane.xlu0 %1064
        %v1066 = vsel %vm784, %v1048, 0.0
        %1067 = vadd.xlane.f32.xlu0 %v1066
        %v1068 = vpop.xlane.xlu0 %1067
        %v1069 = vsel %vm784, %v1049, 0.0
        %1070 = vadd.xlane.f32.xlu0 %v1069
        %v1071 = vpop.xlane.xlu0 %1070
        %v1072 = vmul.f32 %v1062, %v797
        %v1073 = vmul.f32 %v1065, %v797
        %v1074 = vmul.f32 %v1068, %v797
        %v1075 = vmul.f32 %v1071, %v797
        %v1076 = vsub.f32 %v1046, %v1072
        %v1077 = vsub.f32 %v1047, %v1073
        %v1078 = vsub.f32 %v1048, %v1074
        %v1079 = vsub.f32 %v1049, %v1075
        %v1080 = vmul.f32 %v1076, %v1076
        %v1081 = vmul.f32 %v1077, %v1077
        %v1082 = vmul.f32 %v1078, %v1078
        %v1083 = vmul.f32 %v1079, %v1079
        %v1084 = vsel %vm784, %v1080, 0.0
        %1085 = vadd.xlane.f32.xlu0 %v1084
        %v1086 = vpop.xlane.xlu0 %1085
        %v1087 = vsel %vm784, %v1081, 0.0
        %1088 = vadd.xlane.f32.xlu0 %v1087
        %v1089 = vpop.xlane.xlu0 %1088
        %v1090 = vsel %vm784, %v1082, 0.0
        %1091 = vadd.xlane.f32.xlu0 %v1090
        %v1092 = vpop.xlane.xlu0 %1091
        %v1093 = vsel %vm784, %v1083, 0.0
        %1094 = vadd.xlane.f32.xlu0 %v1093
        %v1095 = vpop.xlane.xlu0 %1094
        %v1096 = vmul.f32 %v1086, %v797
        %v1097 = vmul.f32 %v1089, %v797
        %v1098 = vmul.f32 %v1092, %v797
        %v1099 = vmul.f32 %v1095, %v797
        %v1100 = vadd.f32 %v1096, 1e-05
        %v1101 = vadd.f32 %v1097, 1e-05
        %v1102 = vadd.f32 %v1098, 1e-05
        %v1103 = vadd.f32 %v1099, 1e-05
        %v1104 = vrsqrt.pop %v1100
        %v1105 = vrsqrt.pop %v1101
        %v1106 = vrsqrt.pop %v1102
        %v1107 = vrsqrt.pop %v1103
        %v1108 = vmul.f32 %v1076, %v1104
        %v1109 = vmul.f32 %v1077, %v1105
        %v1110 = vmul.f32 %v1078, %v1106
        %v1111 = vmul.f32 %v1079, %v1107
        %v1113 = vlaneseq
        %v1114 = vshrl.u32 %v1113, 7
        %v1115 = vsub.s32 0, %v1114
        %v1116 = vrot.slane %v1050, %v1115
        %v1118 = vmul.f32 %v1108, %v1116
        %v1119 = vmul.f32 %v1109, %v1116
        %v1120 = vmul.f32 %v1110, %v1116
        %v1121 = vmul.f32 %v1111, %v1116
        %v1123 = vlaneseq
        %v1124 = vshrl.u32 %v1123, 7
        %v1125 = vsub.s32 0, %v1124
        %v1126 = vrot.slane %v1051, %v1125
        %v1128 = vadd.f32 %v1118, %v1126
        %v1129 = vadd.f32 %v1119, %v1126
        %v1130 = vadd.f32 %v1120, %v1126
        %v1131 = vadd.f32 %v1121, %v1126
        %1136 = vrot.lane.b32.xlu0 %v1128, 4
        %v1137 = vpop.permute.xlu0 %1136
        %1138 = vrot.lane.b32.xlu0 %v1129, 4
        %v1139 = vpop.permute.xlu0 %1138
        %1140 = vrot.lane.b32.xlu0 %v1130, 4
        %v1141 = vpop.permute.xlu0 %1140
        %1142 = vrot.lane.b32.xlu0 %v1131, 4
        %v1143 = vpop.permute.xlu0 %1142
        %vm1148 = vcmask 31744
        %v1149 = vsel %vm1148, 0.0, %v1137
        %v1150 = vsel %vm1148, 0.0, %v1139
        %v1151 = vsel %vm1148, 0.0, %v1141
        %v1152 = vsel %vm1148, 0.0, %v1143
        %vm1153 = vcmask 293888
        %v1154 = vsel %vm1153, %v1149, 0.0
        %v1155 = vsel %vm1153, %v1150, 0.0
        %v1156 = vsel %vm1153, %v1151, 0.0
        %v1157 = vsel %vm1153, %v1152, 0.0
        %1162 = vrot.lane.b32.xlu0 %v1154, 124
        %v1163 = vpop.permute.xlu0 %1162
        %1164 = vrot.lane.b32.xlu0 %v1155, 124
        %v1165 = vpop.permute.xlu0 %1164
        %1166 = vrot.lane.b32.xlu0 %v1156, 124
        %v1167 = vpop.permute.xlu0 %1166
        %1168 = vrot.lane.b32.xlu0 %v1157, 124
        %v1169 = vpop.permute.xlu0 %1168
        %1174 = vrot.lane.b32.xlu0 %v1154, 120
        %v1175 = vpop.permute.xlu0 %1174
        %1176 = vrot.lane.b32.xlu0 %v1155, 120
        %v1177 = vpop.permute.xlu0 %1176
        %1178 = vrot.lane.b32.xlu0 %v1156, 120
        %v1179 = vpop.permute.xlu0 %1178
        %1180 = vrot.lane.b32.xlu0 %v1157, 120
        %v1181 = vpop.permute.xlu0 %1180
        %1187 = vset.pattern.permute.xlu0 0
        %1188 = vperm.xlu0 %1187, %v1056
        %v1189 = vpop.permute.xlu0 %1188
        %1192 = vset.pattern.permute.xlu0 0
        %1193 = vperm.xlu0 %1192, %v1057
        %v1194 = vpop.permute.xlu0 %1193
        %1197 = vset.pattern.permute.xlu0 0
        %1198 = vperm.xlu0 %1197, %v1058
        %v1199 = vpop.permute.xlu0 %1198
        %1202 = vset.pattern.permute.xlu0 0
        %1203 = vperm.xlu0 %1202, %v1059
        %v1204 = vpop.permute.xlu0 %1203
        %v1207 = vsel %vm932, %v1052, 0
        %v1210 = vsel %vm932, %v1053, 0
        %v1213 = vsel %vm932, %v1054, 0
        %v1216 = vsel %vm932, %v1055, 0
        %1218 = vmatprep.subr.mxu0 0.0
        %1219 = vmatpush1.msra.mxu0 0.0
        %1220 = vmatprep.subr.mxu0 0.0
        %1221 = vmatpush1.msra.mxu0 0.0
        %1222 = vmatprep.subr.mxu0 0.0
        %1223 = vmatpush1.msra.mxu0 0.0
        %1224 = vmatprep.subr.mxu0 0.0
        %1225 = vmatpush1.msra.mxu0 0.0
        %1226 = vmatprep.subr.mxu0 0.0
        %1227 = vmatpush1.msra.mxu0 %v1181
        %1228 = vmatprep.subr.mxu0 0.0
        %1229 = vmatpush1.msra.mxu0 %v1179
        %1230 = vmatprep.subr.mxu0 0.0
        %1231 = vmatpush1.msra.mxu0 %v1177
        %1232 = vmatprep.subr.mxu0 0.0
        %1233 = vmatpush1.msra.mxu0 %v1175
        %1234 = vmatprep.subr.mxu0 0.0
        %1235 = vmatpush1.msra.mxu0 %v1169
        %1236 = vmatprep.subr.mxu0 0.0
        %1237 = vmatpush1.msra.mxu0 %v1167
        %1238 = vmatprep.subr.mxu0 0.0
        %1239 = vmatpush1.msra.mxu0 %v1165
        %1240 = vmatprep.subr.mxu0 0.0
        %1241 = vmatpush1.msra.mxu0 %v1163
        %1242 = vmatprep.subr.mxu0 0.0
        %1243 = vmatpush1.msra.mxu0 %v1157
        %1244 = vmatprep.subr.mxu0 0.0
        %1245 = vmatpush1.msra.mxu0 %v1156
        %1246 = vmatprep.subr.mxu0 0.0
        %1247 = vmatpush1.msra.mxu0 %v1155
        %1248 = vmatprep.subr.mxu0 0.0
        %1249 = vmatpush1.msra.mxu0 %v1154
        %1250 = vmatprep.subr.mxu0 0.0
        %1251 = vmatpush2.msra.mxu0 0.0
        %1252 = vmatprep.subr.mxu0 0.0
        %1253 = vmatpush2.msra.mxu0 0.0
        %1254 = vmatprep.subr.mxu0 0.0
        %1255 = vmatpush2.msra.mxu0 0.0
        %1256 = vmatprep.subr.mxu0 0.0
        %1257 = vmatpush2.msra.mxu0 0.0
        %1258 = vmatprep.subr.mxu0 0.0
        %1259 = vmatpush2.msra.mxu0 0.0
        %1260 = vmatprep.subr.mxu0 0.0
        %1261 = vmatpush2.msra.mxu0 0.0
        %1262 = vmatprep.subr.mxu0 0.0
        %1263 = vmatpush2.msra.mxu0 0.0
        %1264 = vmatprep.subr.mxu0 0.0
        %1265 = vmatpush2.msra.mxu0 0.0
        %1266 = vmatprep.subr.mxu0 0.0
        %1267 = vmatpush2.msra.mxu0 0.0
        %1268 = vmatprep.subr.mxu0 0.0
        %1269 = vmatpush2.msra.mxu0 0.0
        %1270 = vmatprep.subr.mxu0 0.0
        %1271 = vmatpush2.msra.mxu0 0.0
        %1272 = vmatprep.subr.mxu0 0.0
        %1273 = vmatpush2.msra.mxu0 0.0
        %1274 = vmatprep.subr.mxu0 0.0
        %1275 = vmatpush2.msra.mxu0 0.0
        %1276 = vmatprep.subr.mxu0 0.0
        %1277 = vmatpush2.msra.mxu0 0.0
        %1278 = vmatprep.subr.mxu0 0.0
        %1279 = vmatpush2.msra.mxu0 0.0
        %1280 = vmatprep.subr.mxu0 0.0
        %1281 = vmatpush2.msra.mxu0 0.0
        %1282 = vmatprep.mubr.f32.mxu0 0.0
        %1283 = vmatmul.mubr.f32.gmra.mxu0 %v1207
        %v1284 = vpop.f32.mrf.mxu0
        %v1285 = vadd.f32 %v1189, %v1284
        %v1286 = vpop.f32.mrf.mxu0
        %1287 = vmatprep.mubr.f32.mxu0 0.0
        %1288 = vmatmul.mubr.f32.gmra.mxu0 %v1210
        %v1289 = vpop.f32.mrf.mxu0
        %v1290 = vadd.f32 %v1194, %v1289
        %v1291 = vpop.f32.mrf.mxu0
        %1292 = vmatprep.mubr.f32.mxu0 0.0
        %1293 = vmatmul.mubr.f32.gmra.mxu0 %v1213
        %v1294 = vpop.f32.mrf.mxu0
        %v1295 = vadd.f32 %v1199, %v1294
        %v1296 = vpop.f32.mrf.mxu0
        %1297 = vmatprep.mubr.f32.mxu0 0.0
        %1298 = vmatmul.mubr.f32.gmra.mxu0 %v1216
        %v1299 = vpop.f32.mrf.mxu0
        %v1300 = vadd.f32 %v1204, %v1299
        %v1301 = vpop.f32.mrf.mxu0
        %1302 = vdwg.mxu0
        %v1303 = vmul.f32 %v1285, 0.5
        %v1304 = vmul.f32 %v1290, 0.5
        %v1305 = vmul.f32 %v1295, 0.5
        %v1306 = vmul.f32 %v1300, 0.5
        %v1307 = vmul.f32 %v1285, 0.70710677
        %v1308 = vmul.f32 %v1290, 0.70710677
        %v1309 = vmul.f32 %v1295, 0.70710677
        %v1310 = vmul.f32 %v1300, 0.70710677
        %v1311 = verf.f32.pop %v1307
        %v1312 = verf.f32.pop %v1308
        %v1313 = verf.f32.pop %v1309
        %v1314 = verf.f32.pop %v1310
        %v1315 = vadd.f32 %v1311, 1.0
        %v1316 = vadd.f32 %v1312, 1.0
        %v1317 = vadd.f32 %v1313, 1.0
        %v1318 = vadd.f32 %v1314, 1.0
        %v1319 = vmul.f32 %v1303, %v1315
        %v1320 = vmul.f32 %v1304, %v1316
        %v1321 = vmul.f32 %v1305, %v1317
        %v1322 = vmul.f32 %v1306, %v1318
        %v1323 = vadd.f32 %v1319, %v770
        %v1324 = vadd.f32 %v1320, %v771
        %v1325 = vadd.f32 %v1321, %v772
        %v1326 = vadd.f32 %v1322, %v773
        %v1327 = vld [vmem:[#allocation10] sm:$0x1]
        %v1328 = vld [vmem:[#allocation11] sm:$0x1]
        %v1329 = vld [vmem:[%s11] sm:$0xff]
        %v1330 = vld [vmem:[%s11 + $0x8] sm:$0xff]
        %v1331 = vld [vmem:[%s11 + $0x10] sm:$0xff]
        %v1332 = vld [vmem:[%s11 + $0x18] sm:$0xff]
        %v1333 = vld [vmem:[%s12] sm:$0xff]
        %v1334 = vld [vmem:[%s12 + $0x8] sm:$0xff]
        %v1335 = vld [vmem:[%s12 + $0x10] sm:$0xff]
        %v1336 = vld [vmem:[%s12 + $0x18] sm:$0xff]
        %v1337 = vsel %vm784, %v1323, 0.0
        %1338 = vadd.xlane.f32.xlu0 %v1337
        %v1339 = vpop.xlane.xlu0 %1338
        %v1340 = vsel %vm784, %v1324, 0.0
        %1341 = vadd.xlane.f32.xlu0 %v1340
        %v1342 = vpop.xlane.xlu0 %1341
        %v1343 = vsel %vm784, %v1325, 0.0
        %1344 = vadd.xlane.f32.xlu0 %v1343
        %v1345 = vpop.xlane.xlu0 %1344
        %v1346 = vsel %vm784, %v1326, 0.0
        %1347 = vadd.xlane.f32.xlu0 %v1346
        %v1348 = vpop.xlane.xlu0 %1347
        %v1349 = vmul.f32 %v1339, %v797
        %v1350 = vmul.f32 %v1342, %v797
        %v1351 = vmul.f32 %v1345, %v797
        %v1352 = vmul.f32 %v1348, %v797
        %v1353 = vsub.f32 %v1323, %v1349
        %v1354 = vsub.f32 %v1324, %v1350
        %v1355 = vsub.f32 %v1325, %v1351
        %v1356 = vsub.f32 %v1326, %v1352
        %v1357 = vmul.f32 %v1353, %v1353
        %v1358 = vmul.f32 %v1354, %v1354
        %v1359 = vmul.f32 %v1355, %v1355
        %v1360 = vmul.f32 %v1356, %v1356
        %v1361 = vsel %vm784, %v1357, 0.0
        %1362 = vadd.xlane.f32.xlu0 %v1361
        %v1363 = vpop.xlane.xlu0 %1362
        %v1364 = vsel %vm784, %v1358, 0.0
        %1365 = vadd.xlane.f32.xlu0 %v1364
        %v1366 = vpop.xlane.xlu0 %1365
        %v1367 = vsel %vm784, %v1359, 0.0
        %1368 = vadd.xlane.f32.xlu0 %v1367
        %v1369 = vpop.xlane.xlu0 %1368
        %v1370 = vsel %vm784, %v1360, 0.0
        %1371 = vadd.xlane.f32.xlu0 %v1370
        %v1372 = vpop.xlane.xlu0 %1371
        %v1373 = vmul.f32 %v1363, %v797
        %v1374 = vmul.f32 %v1366, %v797
        %v1375 = vmul.f32 %v1369, %v797
        %v1376 = vmul.f32 %v1372, %v797
        %v1377 = vadd.f32 %v1373, 1e-05
        %v1378 = vadd.f32 %v1374, 1e-05
        %v1379 = vadd.f32 %v1375, 1e-05
        %v1380 = vadd.f32 %v1376, 1e-05
        %v1381 = vrsqrt.pop %v1377
        %v1382 = vrsqrt.pop %v1378
        %v1383 = vrsqrt.pop %v1379
        %v1384 = vrsqrt.pop %v1380
        %v1385 = vmul.f32 %v1353, %v1381
        %v1386 = vmul.f32 %v1354, %v1382
        %v1387 = vmul.f32 %v1355, %v1383
        %v1388 = vmul.f32 %v1356, %v1384
        %v1390 = vlaneseq
        %v1391 = vshrl.u32 %v1390, 7
        %v1392 = vsub.s32 0, %v1391
        %v1393 = vrot.slane %v1327, %v1392
        %v1395 = vmul.f32 %v1385, %v1393
        %v1396 = vmul.f32 %v1386, %v1393
        %v1397 = vmul.f32 %v1387, %v1393
        %v1398 = vmul.f32 %v1388, %v1393
        %v1400 = vlaneseq
        %v1401 = vshrl.u32 %v1400, 7
        %v1402 = vsub.s32 0, %v1401
        %v1403 = vrot.slane %v1328, %v1402
        %v1405 = vadd.f32 %v1395, %v1403
        %v1406 = vadd.f32 %v1396, %v1403
        %v1407 = vadd.f32 %v1397, %v1403
        %v1408 = vadd.f32 %v1398, %v1403
        %1413 = vrot.lane.b32.xlu0 %v1405, 1
        %v1414 = vpop.permute.xlu0 %1413
        %1415 = vrot.lane.b32.xlu0 %v1406, 1
        %v1416 = vpop.permute.xlu0 %1415
        %1417 = vrot.lane.b32.xlu0 %v1407, 1
        %v1418 = vpop.permute.xlu0 %1417
        %1419 = vrot.lane.b32.xlu0 %v1408, 1
        %v1420 = vpop.permute.xlu0 %1419
        %v1425 = vsel %vm874, 0.0, %v1414
        %v1426 = vsel %vm874, 0.0, %v1416
        %v1427 = vsel %vm874, 0.0, %v1418
        %v1428 = vsel %vm874, 0.0, %v1420
        %v1429 = vsel %vm879, %v1425, 0.0
        %v1430 = vsel %vm879, %v1426, 0.0
        %v1431 = vsel %vm879, %v1427, 0.0
        %v1432 = vsel %vm879, %v1428, 0.0
        %1437 = vrot.lane.b32.xlu0 %v1429, 127
        %v1438 = vpop.permute.xlu0 %1437
        %1439 = vrot.lane.b32.xlu0 %v1430, 127
        %v1440 = vpop.permute.xlu0 %1439
        %1441 = vrot.lane.b32.xlu0 %v1431, 127
        %v1442 = vpop.permute.xlu0 %1441
        %1443 = vrot.lane.b32.xlu0 %v1432, 127
        %v1444 = vpop.permute.xlu0 %1443
        %1449 = vrot.lane.b32.xlu0 %v1429, 126
        %v1450 = vpop.permute.xlu0 %1449
        %1451 = vrot.lane.b32.xlu0 %v1430, 126
        %v1452 = vpop.permute.xlu0 %1451
        %1453 = vrot.lane.b32.xlu0 %v1431, 126
        %v1454 = vpop.permute.xlu0 %1453
        %1455 = vrot.lane.b32.xlu0 %v1432, 126
        %v1456 = vpop.permute.xlu0 %1455
        %1462 = vset.pattern.permute.xlu0 0
        %1463 = vperm.xlu0 %1462, %v1333
        %v1464 = vpop.permute.xlu0 %1463
        %1467 = vset.pattern.permute.xlu0 0
        %1468 = vperm.xlu0 %1467, %v1334
        %v1469 = vpop.permute.xlu0 %1468
        %1472 = vset.pattern.permute.xlu0 0
        %1473 = vperm.xlu0 %1472, %v1335
        %v1474 = vpop.permute.xlu0 %1473
        %1477 = vset.pattern.permute.xlu0 0
        %1478 = vperm.xlu0 %1477, %v1336
        %v1479 = vpop.permute.xlu0 %1478
        %v1482 = vsel %vm932, %v1329, 0
        %v1485 = vsel %vm932, %v1330, 0
        %v1488 = vsel %vm932, %v1331, 0
        %v1491 = vsel %vm932, %v1332, 0
        %1493 = vmatprep.subr.mxu0 0.0
        %1494 = vmatpush1.msra.mxu0 0.0
        %1495 = vmatprep.subr.mxu0 0.0
        %1496 = vmatpush1.msra.mxu0 0.0
        %1497 = vmatprep.subr.mxu0 0.0
        %1498 = vmatpush1.msra.mxu0 0.0
        %1499 = vmatprep.subr.mxu0 0.0
        %1500 = vmatpush1.msra.mxu0 0.0
        %1501 = vmatprep.subr.mxu0 0.0
        %1502 = vmatpush1.msra.mxu0 %v1456
        %1503 = vmatprep.subr.mxu0 0.0
        %1504 = vmatpush1.msra.mxu0 %v1454
        %1505 = vmatprep.subr.mxu0 0.0
        %1506 = vmatpush1.msra.mxu0 %v1452
        %1507 = vmatprep.subr.mxu0 0.0
        %1508 = vmatpush1.msra.mxu0 %v1450
        %1509 = vmatprep.subr.mxu0 0.0
        %1510 = vmatpush1.msra.mxu0 %v1444
        %1511 = vmatprep.subr.mxu0 0.0
        %1512 = vmatpush1.msra.mxu0 %v1442
        %1513 = vmatprep.subr.mxu0 0.0
        %1514 = vmatpush1.msra.mxu0 %v1440
        %1515 = vmatprep.subr.mxu0 0.0
        %1516 = vmatpush1.msra.mxu0 %v1438
        %1517 = vmatprep.subr.mxu0 0.0
        %1518 = vmatpush1.msra.mxu0 %v1432
        %1519 = vmatprep.subr.mxu0 0.0
        %1520 = vmatpush1.msra.mxu0 %v1431
        %1521 = vmatprep.subr.mxu0 0.0
        %1522 = vmatpush1.msra.mxu0 %v1430
        %1523 = vmatprep.subr.mxu0 0.0
        %1524 = vmatpush1.msra.mxu0 %v1429
        %1525 = vmatprep.subr.mxu0 0.0
        %1526 = vmatpush2.msra.mxu0 0.0
        %1527 = vmatprep.subr.mxu0 0.0
        %1528 = vmatpush2.msra.mxu0 0.0
        %1529 = vmatprep.subr.mxu0 0.0
        %1530 = vmatpush2.msra.mxu0 0.0
        %1531 = vmatprep.subr.mxu0 0.0
        %1532 = vmatpush2.msra.mxu0 0.0
        %1533 = vmatprep.subr.mxu0 0.0
        %1534 = vmatpush2.msra.mxu0 0.0
        %1535 = vmatprep.subr.mxu0 0.0
        %1536 = vmatpush2.msra.mxu0 0.0
        %1537 = vmatprep.subr.mxu0 0.0
        %1538 = vmatpush2.msra.mxu0 0.0
        %1539 = vmatprep.subr.mxu0 0.0
        %1540 = vmatpush2.msra.mxu0 0.0
        %1541 = vmatprep.subr.mxu0 0.0
        %1542 = vmatpush2.msra.mxu0 0.0
        %1543 = vmatprep.subr.mxu0 0.0
        %1544 = vmatpush2.msra.mxu0 0.0
        %1545 = vmatprep.subr.mxu0 0.0
        %1546 = vmatpush2.msra.mxu0 0.0
        %1547 = vmatprep.subr.mxu0 0.0
        %1548 = vmatpush2.msra.mxu0 0.0
        %1549 = vmatprep.subr.mxu0 0.0
        %1550 = vmatpush2.msra.mxu0 0.0
        %1551 = vmatprep.subr.mxu0 0.0
        %1552 = vmatpush2.msra.mxu0 0.0
        %1553 = vmatprep.subr.mxu0 0.0
        %1554 = vmatpush2.msra.mxu0 0.0
        %1555 = vmatprep.subr.mxu0 0.0
        %1556 = vmatpush2.msra.mxu0 0.0
        %1557 = vmatprep.mubr.f32.mxu0 0.0
        %1558 = vmatmul.mubr.f32.gmra.mxu0 %v1482
        %v1559 = vpop.f32.mrf.mxu0
        %v1560 = vadd.f32 %v1464, %v1559
        %v1561 = vpop.f32.mrf.mxu0
        %1562 = vmatprep.mubr.f32.mxu0 0.0
        %1563 = vmatmul.mubr.f32.gmra.mxu0 %v1485
        %v1564 = vpop.f32.mrf.mxu0
        %v1565 = vadd.f32 %v1469, %v1564
        %v1566 = vpop.f32.mrf.mxu0
        %1567 = vmatprep.mubr.f32.mxu0 0.0
        %1568 = vmatmul.mubr.f32.gmra.mxu0 %v1488
        %v1569 = vpop.f32.mrf.mxu0
        %v1570 = vadd.f32 %v1474, %v1569
        %v1571 = vpop.f32.mrf.mxu0
        %1572 = vmatprep.mubr.f32.mxu0 0.0
        %1573 = vmatmul.mubr.f32.gmra.mxu0 %v1491
        %v1574 = vpop.f32.mrf.mxu0
        %v1575 = vadd.f32 %v1479, %v1574
        %v1576 = vpop.f32.mrf.mxu0
        %1577 = vdwg.mxu0
        %v1578 = vmul.f32 %v1560, 0.5
        %v1579 = vmul.f32 %v1565, 0.5
        %v1580 = vmul.f32 %v1570, 0.5
        %v1581 = vmul.f32 %v1575, 0.5
        %v1582 = vmul.f32 %v1560, 0.70710677
        %v1583 = vmul.f32 %v1565, 0.70710677
        %v1584 = vmul.f32 %v1570, 0.70710677
        %v1585 = vmul.f32 %v1575, 0.70710677
        %v1586 = verf.f32.pop %v1582
        %v1587 = verf.f32.pop %v1583
        %v1588 = verf.f32.pop %v1584
        %v1589 = verf.f32.pop %v1585
        %v1590 = vadd.f32 %v1586, 1.0
        %v1591 = vadd.f32 %v1587, 1.0
        %v1592 = vadd.f32 %v1588, 1.0
        %v1593 = vadd.f32 %v1589, 1.0
        %v1594 = vmul.f32 %v1578, %v1590
        %v1595 = vmul.f32 %v1579, %v1591
        %v1596 = vmul.f32 %v1580, %v1592
        %v1597 = vmul.f32 %v1581, %v1593
        %v1598 = vld [vmem:[#allocation13] sm:$0x1]
        %v1599 = vld [vmem:[#allocation14] sm:$0x1]
        %v1600 = vld [vmem:[#allocation16] sm:$0xff]
        %v1601 = vld [vmem:[#allocation16 + $0x8] sm:$0xff]
        %v1602 = vld [vmem:[#allocation16 + $0x10] sm:$0xff]
        %v1603 = vld [vmem:[#allocation16 + $0x18] sm:$0xff]
        %v1604 = vld [vmem:[%s16] sm:$0xff]
        %v1605 = vld [vmem:[%s16 + $0x8] sm:$0xff]
        %v1606 = vld [vmem:[%s16 + $0x10] sm:$0xff]
        %v1607 = vld [vmem:[%s16 + $0x18] sm:$0xff]
        %v1608 = vsel %vm784, %v1594, 0.0
        %1609 = vadd.xlane.f32.xlu0 %v1608
        %v1610 = vpop.xlane.xlu0 %1609
        %v1611 = vsel %vm784, %v1595, 0.0
        %1612 = vadd.xlane.f32.xlu0 %v1611
        %v1613 = vpop.xlane.xlu0 %1612
        %v1614 = vsel %vm784, %v1596, 0.0
        %1615 = vadd.xlane.f32.xlu0 %v1614
        %v1616 = vpop.xlane.xlu0 %1615
        %v1617 = vsel %vm784, %v1597, 0.0
        %1618 = vadd.xlane.f32.xlu0 %v1617
        %v1619 = vpop.xlane.xlu0 %1618
        %v1620 = vmul.f32 %v1610, %v797
        %v1621 = vmul.f32 %v1613, %v797
        %v1622 = vmul.f32 %v1616, %v797
        %v1623 = vmul.f32 %v1619, %v797
        %v1624 = vsub.f32 %v1594, %v1620
        %v1625 = vsub.f32 %v1595, %v1621
        %v1626 = vsub.f32 %v1596, %v1622
        %v1627 = vsub.f32 %v1597, %v1623
        %v1628 = vmul.f32 %v1624, %v1624
        %v1629 = vmul.f32 %v1625, %v1625
        %v1630 = vmul.f32 %v1626, %v1626
        %v1631 = vmul.f32 %v1627, %v1627
        %v1632 = vsel %vm784, %v1628, 0.0
        %1633 = vadd.xlane.f32.xlu0 %v1632
        %v1634 = vpop.xlane.xlu0 %1633
        %v1635 = vsel %vm784, %v1629, 0.0
        %1636 = vadd.xlane.f32.xlu0 %v1635
        %v1637 = vpop.xlane.xlu0 %1636
        %v1638 = vsel %vm784, %v1630, 0.0
        %1639 = vadd.xlane.f32.xlu0 %v1638
        %v1640 = vpop.xlane.xlu0 %1639
        %v1641 = vsel %vm784, %v1631, 0.0
        %1642 = vadd.xlane.f32.xlu0 %v1641
        %v1643 = vpop.xlane.xlu0 %1642
        %v1644 = vmul.f32 %v1634, %v797
        %v1645 = vmul.f32 %v1637, %v797
        %v1646 = vmul.f32 %v1640, %v797
        %v1647 = vmul.f32 %v1643, %v797
        %v1648 = vadd.f32 %v1644, 1e-05
        %v1649 = vadd.f32 %v1645, 1e-05
        %v1650 = vadd.f32 %v1646, 1e-05
        %v1651 = vadd.f32 %v1647, 1e-05
        %v1652 = vrsqrt.pop %v1648
        %v1653 = vrsqrt.pop %v1649
        %v1654 = vrsqrt.pop %v1650
        %v1655 = vrsqrt.pop %v1651
        %v1656 = vmul.f32 %v1624, %v1652
        %v1657 = vmul.f32 %v1625, %v1653
        %v1658 = vmul.f32 %v1626, %v1654
        %v1659 = vmul.f32 %v1627, %v1655
        %v1661 = vlaneseq
        %v1662 = vshrl.u32 %v1661, 7
        %v1663 = vsub.s32 0, %v1662
        %v1664 = vrot.slane %v1598, %v1663
        %v1666 = vmul.f32 %v1656, %v1664
        %v1667 = vmul.f32 %v1657, %v1664
        %v1668 = vmul.f32 %v1658, %v1664
        %v1669 = vmul.f32 %v1659, %v1664
        %v1671 = vlaneseq
        %v1672 = vshrl.u32 %v1671, 7
        %v1673 = vsub.s32 0, %v1672
        %v1674 = vrot.slane %v1599, %v1673
        %v1676 = vadd.f32 %v1666, %v1674
        %v1677 = vadd.f32 %v1667, %v1674
        %v1678 = vadd.f32 %v1668, %v1674
        %v1679 = vadd.f32 %v1669, %v1674
        %1684 = vrot.lane.b32.xlu0 %v1676, 4
        %v1685 = vpop.permute.xlu0 %1684
        %1686 = vrot.lane.b32.xlu0 %v1677, 4
        %v1687 = vpop.permute.xlu0 %1686
        %1688 = vrot.lane.b32.xlu0 %v1678, 4
        %v1689 = vpop.permute.xlu0 %1688
        %1690 = vrot.lane.b32.xlu0 %v1679, 4
        %v1691 = vpop.permute.xlu0 %1690
        %v1696 = vsel %vm1148, 0.0, %v1685
        %v1697 = vsel %vm1148, 0.0, %v1687
        %v1698 = vsel %vm1148, 0.0, %v1689
        %v1699 = vsel %vm1148, 0.0, %v1691
        %v1700 = vsel %vm1153, %v1696, 0.0
        %v1701 = vsel %vm1153, %v1697, 0.0
        %v1702 = vsel %vm1153, %v1698, 0.0
        %v1703 = vsel %vm1153, %v1699, 0.0
        %1708 = vrot.lane.b32.xlu0 %v1700, 124
        %v1709 = vpop.permute.xlu0 %1708
        %1710 = vrot.lane.b32.xlu0 %v1701, 124
        %v1711 = vpop.permute.xlu0 %1710
        %1712 = vrot.lane.b32.xlu0 %v1702, 124
        %v1713 = vpop.permute.xlu0 %1712
        %1714 = vrot.lane.b32.xlu0 %v1703, 124
        %v1715 = vpop.permute.xlu0 %1714
        %1720 = vrot.lane.b32.xlu0 %v1700, 120
        %v1721 = vpop.permute.xlu0 %1720
        %1722 = vrot.lane.b32.xlu0 %v1701, 120
        %v1723 = vpop.permute.xlu0 %1722
        %1724 = vrot.lane.b32.xlu0 %v1702, 120
        %v1725 = vpop.permute.xlu0 %1724
        %1726 = vrot.lane.b32.xlu0 %v1703, 120
        %v1727 = vpop.permute.xlu0 %1726
        %1733 = vset.pattern.permute.xlu0 0
        %1734 = vperm.xlu0 %1733, %v1604
        %v1735 = vpop.permute.xlu0 %1734
        %1738 = vset.pattern.permute.xlu0 0
        %1739 = vperm.xlu0 %1738, %v1605
        %v1740 = vpop.permute.xlu0 %1739
        %1743 = vset.pattern.permute.xlu0 0
        %1744 = vperm.xlu0 %1743, %v1606
        %v1745 = vpop.permute.xlu0 %1744
        %1748 = vset.pattern.permute.xlu0 0
        %1749 = vperm.xlu0 %1748, %v1607
        %v1750 = vpop.permute.xlu0 %1749
        %v1753 = vsel %vm932, %v1600, 0
        %v1756 = vsel %vm932, %v1601, 0
        %v1759 = vsel %vm932, %v1602, 0
        %v1762 = vsel %vm932, %v1603, 0
        %1764 = vmatprep.subr.mxu0 0.0
        %1765 = vmatpush1.msra.mxu0 0.0
        %1766 = vmatprep.subr.mxu0 0.0
        %1767 = vmatpush1.msra.mxu0 0.0
        %1768 = vmatprep.subr.mxu0 0.0
        %1769 = vmatpush1.msra.mxu0 0.0
        %1770 = vmatprep.subr.mxu0 0.0
        %1771 = vmatpush1.msra.mxu0 0.0
        %1772 = vmatprep.subr.mxu0 0.0
        %1773 = vmatpush1.msra.mxu0 %v1727
        %1774 = vmatprep.subr.mxu0 0.0
        %1775 = vmatpush1.msra.mxu0 %v1725
        %1776 = vmatprep.subr.mxu0 0.0
        %1777 = vmatpush1.msra.mxu0 %v1723
        %1778 = vmatprep.subr.mxu0 0.0
        %1779 = vmatpush1.msra.mxu0 %v1721
        %1780 = vmatprep.subr.mxu0 0.0
        %1781 = vmatpush1.msra.mxu0 %v1715
        %1782 = vmatprep.subr.mxu0 0.0
        %1783 = vmatpush1.msra.mxu0 %v1713
        %1784 = vmatprep.subr.mxu0 0.0
        %1785 = vmatpush1.msra.mxu0 %v1711
        %1786 = vmatprep.subr.mxu0 0.0
        %1787 = vmatpush1.msra.mxu0 %v1709
        %1788 = vmatprep.subr.mxu0 0.0
        %1789 = vmatpush1.msra.mxu0 %v1703
        %1790 = vmatprep.subr.mxu0 0.0
        %1791 = vmatpush1.msra.mxu0 %v1702
        %1792 = vmatprep.subr.mxu0 0.0
        %1793 = vmatpush1.msra.mxu0 %v1701
        %1794 = vmatprep.subr.mxu0 0.0
        %1795 = vmatpush1.msra.mxu0 %v1700
        %1796 = vmatprep.subr.mxu0 0.0
        %1797 = vmatpush2.msra.mxu0 0.0
        %1798 = vmatprep.subr.mxu0 0.0
        %1799 = vmatpush2.msra.mxu0 0.0
        %1800 = vmatprep.subr.mxu0 0.0
        %1801 = vmatpush2.msra.mxu0 0.0
        %1802 = vmatprep.subr.mxu0 0.0
        %1803 = vmatpush2.msra.mxu0 0.0
        %1804 = vmatprep.subr.mxu0 0.0
        %1805 = vmatpush2.msra.mxu0 0.0
        %1806 = vmatprep.subr.mxu0 0.0
        %1807 = vmatpush2.msra.mxu0 0.0
        %1808 = vmatprep.subr.mxu0 0.0
        %1809 = vmatpush2.msra.mxu0 0.0
        %1810 = vmatprep.subr.mxu0 0.0
        %1811 = vmatpush2.msra.mxu0 0.0
        %1812 = vmatprep.subr.mxu0 0.0
        %1813 = vmatpush2.msra.mxu0 0.0
        %1814 = vmatprep.subr.mxu0 0.0
        %1815 = vmatpush2.msra.mxu0 0.0
        %1816 = vmatprep.subr.mxu0 0.0
        %1817 = vmatpush2.msra.mxu0 0.0
        %1818 = vmatprep.subr.mxu0 0.0
        %1819 = vmatpush2.msra.mxu0 0.0
        %1820 = vmatprep.subr.mxu0 0.0
        %1821 = vmatpush2.msra.mxu0 0.0
        %1822 = vmatprep.subr.mxu0 0.0
        %1823 = vmatpush2.msra.mxu0 0.0
        %1824 = vmatprep.subr.mxu0 0.0
        %1825 = vmatpush2.msra.mxu0 0.0
        %1826 = vmatprep.subr.mxu0 0.0
        %1827 = vmatpush2.msra.mxu0 0.0
        %1828 = vmatprep.mubr.f32.mxu0 0.0
        %1829 = vmatmul.mubr.f32.gmra.mxu0 %v1753
        %v1830 = vpop.f32.mrf.mxu0
        %v1831 = vadd.f32 %v1735, %v1830
        %v1832 = vpop.f32.mrf.mxu0
        %1833 = vmatprep.mubr.f32.mxu0 0.0
        %1834 = vmatmul.mubr.f32.gmra.mxu0 %v1756
        %v1835 = vpop.f32.mrf.mxu0
        %v1836 = vadd.f32 %v1740, %v1835
        %v1837 = vpop.f32.mrf.mxu0
        %1838 = vmatprep.mubr.f32.mxu0 0.0
        %1839 = vmatmul.mubr.f32.gmra.mxu0 %v1759
        %v1840 = vpop.f32.mrf.mxu0
        %v1841 = vadd.f32 %v1745, %v1840
        %v1842 = vpop.f32.mrf.mxu0
        %1843 = vmatprep.mubr.f32.mxu0 0.0
        %1844 = vmatmul.mubr.f32.gmra.mxu0 %v1762
        %v1845 = vpop.f32.mrf.mxu0
        %v1846 = vadd.f32 %v1750, %v1845
        %v1847 = vpop.f32.mrf.mxu0
        %1848 = vdwg.mxu0
        %v1849 = vmul.f32 %v1831, 0.5
        %v1850 = vmul.f32 %v1836, 0.5
        %v1851 = vmul.f32 %v1841, 0.5
        %v1852 = vmul.f32 %v1846, 0.5
        %v1853 = vmul.f32 %v1831, 0.70710677
        %v1854 = vmul.f32 %v1836, 0.70710677
        %v1855 = vmul.f32 %v1841, 0.70710677
        %v1856 = vmul.f32 %v1846, 0.70710677
        %v1857 = verf.f32.pop %v1853
        %v1858 = verf.f32.pop %v1854
        %v1859 = verf.f32.pop %v1855
        %v1860 = verf.f32.pop %v1856
        %v1861 = vadd.f32 %v1857, 1.0
        %v1862 = vadd.f32 %v1858, 1.0
        %v1863 = vadd.f32 %v1859, 1.0
        %v1864 = vadd.f32 %v1860, 1.0
        %v1865 = vmul.f32 %v1849, %v1861
        %v1866 = vmul.f32 %v1850, %v1862
        %v1867 = vmul.f32 %v1851, %v1863
        %v1868 = vmul.f32 %v1852, %v1864
        %v1869 = vadd.f32 %v1865, %v1323
        %v1870 = vadd.f32 %v1866, %v1324
        %v1871 = vadd.f32 %v1867, %v1325
        %v1872 = vadd.f32 %v1868, %v1326
        %v1873 = vld [vmem:[%s17] sm:$0x1]
        %v1874 = vld [vmem:[%s18] sm:$0x1]
        %v1875 = vld [vmem:[%s19] sm:$0xff]
        %v1876 = vld [vmem:[%s20] sm:$0xff]
        %v1877 = vsel %vm784, %v1869, 0.0
        %1878 = vadd.xlane.f32.xlu0 %v1877
        %v1879 = vpop.xlane.xlu0 %1878
        %v1880 = vsel %vm784, %v1870, 0.0
        %1881 = vadd.xlane.f32.xlu0 %v1880
        %v1882 = vpop.xlane.xlu0 %1881
        %v1883 = vsel %vm784, %v1871, 0.0
        %1884 = vadd.xlane.f32.xlu0 %v1883
        %v1885 = vpop.xlane.xlu0 %1884
        %v1886 = vsel %vm784, %v1872, 0.0
        %1887 = vadd.xlane.f32.xlu0 %v1886
        %v1888 = vpop.xlane.xlu0 %1887
        %v1889 = vmul.f32 %v1879, %v797
        %v1890 = vmul.f32 %v1882, %v797
        %v1891 = vmul.f32 %v1885, %v797
        %v1892 = vmul.f32 %v1888, %v797
        %v1893 = vsub.f32 %v1869, %v1889
        %v1894 = vsub.f32 %v1870, %v1890
        %v1895 = vsub.f32 %v1871, %v1891
        %v1896 = vsub.f32 %v1872, %v1892
        %v1897 = vmul.f32 %v1893, %v1893
        %v1898 = vmul.f32 %v1894, %v1894
        %v1899 = vmul.f32 %v1895, %v1895
        %v1900 = vmul.f32 %v1896, %v1896
        %v1901 = vsel %vm784, %v1897, 0.0
        %1902 = vadd.xlane.f32.xlu0 %v1901
        %v1903 = vpop.xlane.xlu0 %1902
        %v1904 = vsel %vm784, %v1898, 0.0
        %1905 = vadd.xlane.f32.xlu0 %v1904
        %v1906 = vpop.xlane.xlu0 %1905
        %v1907 = vsel %vm784, %v1899, 0.0
        %1908 = vadd.xlane.f32.xlu0 %v1907
        %v1909 = vpop.xlane.xlu0 %1908
        %v1910 = vsel %vm784, %v1900, 0.0
        %1911 = vadd.xlane.f32.xlu0 %v1910
        %v1912 = vpop.xlane.xlu0 %1911
        %v1913 = vmul.f32 %v1903, %v797
        %v1914 = vmul.f32 %v1906, %v797
        %v1915 = vmul.f32 %v1909, %v797
        %v1916 = vmul.f32 %v1912, %v797
        %v1917 = vadd.f32 %v1913, 1e-05
        %v1918 = vadd.f32 %v1914, 1e-05
        %v1919 = vadd.f32 %v1915, 1e-05
        %v1920 = vadd.f32 %v1916, 1e-05
        %v1921 = vrsqrt.pop %v1917
        %v1922 = vrsqrt.pop %v1918
        %v1923 = vrsqrt.pop %v1919
        %v1924 = vrsqrt.pop %v1920
        %v1925 = vmul.f32 %v1893, %v1921
        %v1926 = vmul.f32 %v1894, %v1922
        %v1927 = vmul.f32 %v1895, %v1923
        %v1928 = vmul.f32 %v1896, %v1924
        %v1930 = vlaneseq
        %v1931 = vshrl.u32 %v1930, 7
        %v1932 = vsub.s32 0, %v1931
        %v1933 = vrot.slane %v1873, %v1932
        %v1935 = vmul.f32 %v1925, %v1933
        %v1936 = vmul.f32 %v1926, %v1933
        %v1937 = vmul.f32 %v1927, %v1933
        %v1938 = vmul.f32 %v1928, %v1933
        %v1940 = vlaneseq
        %v1941 = vshrl.u32 %v1940, 7
        %v1942 = vsub.s32 0, %v1941
        %v1943 = vrot.slane %v1874, %v1942
        %v1945 = vadd.f32 %v1935, %v1943
        %v1946 = vadd.f32 %v1936, %v1943
        %v1947 = vadd.f32 %v1937, %v1943
        %v1948 = vadd.f32 %v1938, %v1943
        %1950 = vset.pattern.permute.xlu0 0
        %1951 = vperm.xlu0 %1950, %v1876
        %v1952 = vpop.permute.xlu0 %1951
        %v1955 = vsel %vm784, %v1875, 0
        %1957 = vmatprep.subr.mxu0 0.0
        %1958 = vmatpush1.msra.mxu0 0.0
        %1959 = vmatprep.subr.mxu0 0.0
        %1960 = vmatpush1.msra.mxu0 0.0
        %1961 = vmatprep.subr.mxu0 0.0
        %1962 = vmatpush1.msra.mxu0 0.0
        %1963 = vmatprep.subr.mxu0 0.0
        %1964 = vmatpush1.msra.mxu0 0.0
        %1965 = vmatprep.subr.mxu0 0.0
        %1966 = vmatpush1.msra.mxu0 0.0
        %1967 = vmatprep.subr.mxu0 0.0
        %1968 = vmatpush1.msra.mxu0 0.0
        %1969 = vmatprep.subr.mxu0 0.0
        %1970 = vmatpush1.msra.mxu0 0.0
        %1971 = vmatprep.subr.mxu0 0.0
        %1972 = vmatpush1.msra.mxu0 0.0
        %1973 = vmatprep.subr.mxu0 0.0
        %1974 = vmatpush1.msra.mxu0 0.0
        %1975 = vmatprep.subr.mxu0 0.0
        %1976 = vmatpush1.msra.mxu0 0.0
        %1977 = vmatprep.subr.mxu0 0.0
        %1978 = vmatpush1.msra.mxu0 0.0
        %1979 = vmatprep.subr.mxu0 0.0
        %1980 = vmatpush1.msra.mxu0 0.0
        %1981 = vmatprep.subr.mxu0 0.0
        %1982 = vmatpush1.msra.mxu0 %v1948
        %1983 = vmatprep.subr.mxu0 0.0
        %1984 = vmatpush1.msra.mxu0 %v1947
        %1985 = vmatprep.subr.mxu0 0.0
        %1986 = vmatpush1.msra.mxu0 %v1946
        %1987 = vmatprep.subr.mxu0 0.0
        %1988 = vmatpush1.msra.mxu0 %v1945
        %1989 = vmatprep.subr.mxu0 0.0
        %1990 = vmatpush2.msra.mxu0 0.0
        %1991 = vmatprep.subr.mxu0 0.0
        %1992 = vmatpush2.msra.mxu0 0.0
        %1993 = vmatprep.subr.mxu0 0.0
        %1994 = vmatpush2.msra.mxu0 0.0
        %1995 = vmatprep.subr.mxu0 0.0
        %1996 = vmatpush2.msra.mxu0 0.0
        %1997 = vmatprep.subr.mxu0 0.0
        %1998 = vmatpush2.msra.mxu0 0.0
        %1999 = vmatprep.subr.mxu0 0.0
        %2000 = vmatpush2.msra.mxu0 0.0
        %2001 = vmatprep.subr.mxu0 0.0
        %2002 = vmatpush2.msra.mxu0 0.0
        %2003 = vmatprep.subr.mxu0 0.0
        %2004 = vmatpush2.msra.mxu0 0.0
        %2005 = vmatprep.subr.mxu0 0.0
        %2006 = vmatpush2.msra.mxu0 0.0
        %2007 = vmatprep.subr.mxu0 0.0
        %2008 = vmatpush2.msra.mxu0 0.0
        %2009 = vmatprep.subr.mxu0 0.0
        %2010 = vmatpush2.msra.mxu0 0.0
        %2011 = vmatprep.subr.mxu0 0.0
        %2012 = vmatpush2.msra.mxu0 0.0
        %2013 = vmatprep.subr.mxu0 0.0
        %2014 = vmatpush2.msra.mxu0 0.0
        %2015 = vmatprep.subr.mxu0 0.0
        %2016 = vmatpush2.msra.mxu0 0.0
        %2017 = vmatprep.subr.mxu0 0.0
        %2018 = vmatpush2.msra.mxu0 0.0
        %2019 = vmatprep.subr.mxu0 0.0
        %2020 = vmatpush2.msra.mxu0 0.0
        %2021 = vmatprep.mubr.f32.mxu0 0.0
        %2022 = vmatmul.mubr.f32.gmra.mxu0 %v1955
        %v2023 = vpop.f32.mrf.mxu0
        %v2024 = vadd.f32 %v1952, %v2023
        %v2025 = vpop.f32.mrf.mxu0
        %2026 = vdwg.mxu0
        %2027 = vst.msk [vmem:[%s764] sm:$0xff] %vm784, %v2024
        %s2028 = sand.u32 %s494, 1
        %s2029 = scalar_lea.sflag [#allocation4], %s2028
        %s2030 = sand.u32 %s494, 1
        %s2031 = smul.addr %s2030, 8
        %s2032 = scalar_lea.vmem [#allocation17], %s2031
        // Predicated region
        $region141: #{tpu_custom_call.1} parent=103 // pred_check
          %p2033 = pneg %p504
        $region142: #{tpu_custom_call.1} parent=103 // pred_check_branch
          %2035 = sbr.rel (%p2033) target = $region144
        $region143: #{tpu_custom_call.1} parent=103 // pred_region
          %s2037 = ssub.s32 128, 128
          %2038 = vsyncadd %s2029, %s2037
          %s2039 = smul.addr %s40, 128
          %s2040 = scalar_lea.hbm %s21, %s2039
          %s2042 = sshll.u32 %s2032, 4
          %s2043 = int_to_ptr.vmem [resolvable:$true] %s2042
          %2045 = dma.vmem_to_hbm [thread:$0]  %s2043, 128, %s2040, %s2029
        $region144: #{tpu_custom_call.1} parent=103 // pred_fallthru
          _
      $region104: #{tpu_custom_call.1} parent=5 // pred_fallthru
        _
      %p2046 = scmp.le.s32.totalorder 2, %s35
      // Predicated region
      $region145: #{tpu_custom_call.1} parent=5 // pred_check
        %p2047 = pneg %p2046
      $region146: #{tpu_custom_call.1} parent=5 // pred_check_branch
        %2049 = sbr.rel (%p2047) target = $region148
      $region147: #{tpu_custom_call.1} parent=5 // pred_region
        %s2050 = ssub.s32 %s35, 2
        // Predicated region
        $region149: #{tpu_custom_call.1} parent=147 // pred_check
          %p2051 = pneg %p510
        $region150: #{tpu_custom_call.1} parent=147 // pred_check_branch
          %2053 = sbr.rel (%p2051) target = $region152
        $region151: #{tpu_custom_call.1} parent=147 // pred_region
          %s2054 = sand.u32 %s495, 1
          %s2055 = scalar_lea.sflag [#allocation4], %s2054
          %s2056 = sand.u32 %s495, 1
          %s2057 = smul.addr %s2056, 8
          %s2058 = scalar_lea.vmem [#allocation17], %s2057
          %2059 = dma.done %s2055, 128
        $region152: #{tpu_custom_call.1} parent=147 // pred_fallthru
          _
      $region148: #{tpu_custom_call.1} parent=5 // pred_fallthru
        _
    $region6: #{tpu_custom_call.1} parent=1 // loop_footer
      %s39 = sadd.s32 1, %s35
    $region7: #{tpu_custom_call.1} parent=1 // loop_footer_branch
      %34 = sbr.rel target = $region3
    $region8: #{tpu_custom_call.1} parent=1 // loop_exit
      _
    %2060 = vsyncpa [#allocation3], 1
    %s2061 = scalar_lea.sflag [#allocation3], 1
    %2062 = vsyncpa %s2061, 1
    %2063 = vsyncpa [#allocation6], 1
    %2064 = vsyncpa [#allocation9], 1
    %2065 = vsyncpa [#allocation12], 1
    %2066 = vsyncpa [#allocation15], 1
    %2067 = vsyncpa [#allocation4], 1
    %s2068 = scalar_lea.sflag [#allocation4], 1
    %2069 = vsyncpa %s2068, 1

</llo_original>
